<compile_context>
chip_gen: v7x
topology: tpu7x:2x2x1
jax: 0.10.0
libtpu: 0.0.40
codegen_flags: <defaults>
</compile_context>

<pallas_src>
import jax
import jax.numpy as jnp
from jax.experimental import pallas as pl
from jax.experimental.pallas import tpu as pltpu

BN_EPS = 1e-5


def _round8(n):
    return ((n + 7) // 8) * 8


def _round_up(n, m):
    return ((n + m - 1) // m) * m


# ------------------------------ Pallas kernel ------------------------------ #
def _make_kernel(H, W, HALO, n1x1, n3x3, n5x5, pool_planes,
                 off2, off3, nred_p, n5x5_p, off_t3b):
    M = H * W
    OFFSETS = [(dy, dx) for dy in (-1, 0, 1) for dx in (-1, 0, 1)]  # k = ky*3+kx
    oc2 = n1x1
    oc3 = n1x1 + n3x3
    oc4 = oc3 + n5x5

    def kernel(x_ref, m_ref, w1_ref, b12_ref, w23_ref, b23_ref,
               w3c_ref, b3c_ref, b5_ref, o_ref, halo_ref, taps_ref):
        cmax = halo_ref.shape[0]
        # Zero the halo borders every step (scratch persists across the grid
        # and may be sharded across cores, so do not gate this on program_id).
        zero_border = jnp.zeros((cmax, HALO), jnp.float32)
        halo_ref[:, 0:HALO] = zero_border
        halo_ref[:, HALO + M:HALO + M + HALO] = zero_border

        mask_l = m_ref[0:1, :]   # 1 where x > 0      (valid to read column x-1)
        mask_r = m_ref[1:2, :]   # 1 where x < W - 1  (valid to read column x+1)

        def build_taps(v, c_pad):
            # v: (c_pad, M).  Writes the 9 shifted+masked taps stacked along the
            # contraction axis: tap k occupies taps_ref rows [k*c_pad, (k+1)*c_pad).
            halo_ref[0:c_pad, HALO:HALO + M] = v
            for k, (dy, dx) in enumerate(OFFSETS):
                s = dy * W + dx
                sv = v if s == 0 else halo_ref[0:c_pad, HALO + s:HALO + s + M]
                if dx == -1:
                    sv = sv * mask_l
                elif dx == 1:
                    sv = sv * mask_r
                taps_ref[k * c_pad:(k + 1) * c_pad, :] = sv

        xT = x_ref[...]                                          # (Cin, M)

        # ---- merged shared-input 1x1 convs: b1 | b2a;b3a | b5/9 (pre-pool) ----
        u = jnp.dot(w1_ref[...], xT, preferred_element_type=jnp.float32)
        ur = jnp.maximum(u[0:off3] + b12_ref[...], 0.0)
        o_ref[0:n1x1, :] = ur[0:n1x1]                            # branch 1 done
        t2t3 = ur[off2:off3]                                     # (nred_p, M)
        v5 = u[off3:off3 + pool_planes]                          # raw (pool before bias/relu)

        # ---- branch 2 (3x3) + branch 3 first 3x3: one tap-stack, one matmul ----
        build_taps(t2t3, nred_p)
        v23 = jnp.dot(w23_ref[...], taps_ref[0:9 * nred_p, :],
                      preferred_element_type=jnp.float32)
        v23 = jnp.maximum(v23 + b23_ref[...], 0.0)
        o_ref[oc2:oc2 + n3x3, :] = v23[0:n3x3]                   # branch 2 done
        t3b = v23[off_t3b:off_t3b + n5x5_p]

        # ---- branch 3 second 3x3 ----
        build_taps(t3b, n5x5_p)
        y3 = jnp.dot(w3c_ref[...], taps_ref[0:9 * n5x5_p, :],
                     preferred_element_type=jnp.float32)
        o_ref[oc3:oc3 + n5x5, :] = jnp.maximum(y3 + b3c_ref[...], 0.0)

        # ---- branch 4: separable 3x3 sum of v5 (avg /9 folded into the 1x1) ----
        halo_ref[0:pool_planes, HALO:HALO + M] = v5
        hsum = (v5
                + halo_ref[0:pool_planes, HALO - 1:HALO - 1 + M] * mask_l
                + halo_ref[0:pool_planes, HALO + 1:HALO + 1 + M] * mask_r)
        halo_ref[0:pool_planes, HALO:HALO + M] = hsum
        vsum = (hsum
                + halo_ref[0:pool_planes, HALO - W:HALO - W + M]
                + halo_ref[0:pool_planes, HALO + W:HALO + W + M])
        o_ref[oc4:oc4 + pool_planes, :] = jnp.maximum(vsum + b5_ref[...], 0.0)

    return kernel


# ------------------------------- glue (JAX) -------------------------------- #
def _fold_bn(p, eps=BN_EPS):
    inv = p["gamma"] / jnp.sqrt(p["var"] + eps)
    bias = p["beta"] + inv * (p["b"] - p["mean"])
    return inv, bias


def _w1x1(p):
    inv, bias = _fold_bn(p)
    return p["w"][:, :, 0, 0] * inv[:, None], bias[:, None]      # (Cout,Cin),(Cout,1)


def _w3x3_stacked(p, cin_pad, col_off):
    # (Cout, Cin, 3, 3) -> (Cout, 9*cin_pad) stacked on the contraction axis,
    # tap k = ky*3+kx, channel c at column k*cin_pad + col_off + c.  BN folded.
    inv, bias = _fold_bn(p)
    w = p["w"] * inv[:, None, None, None]
    cout, cin = w.shape[:2]
    wt = jnp.transpose(w, (0, 2, 3, 1)).reshape(cout, 9, cin)
    full = jnp.zeros((cout, 9, cin_pad), jnp.float32)
    full = full.at[:, :, col_off:col_off + cin].set(wt)
    return full.reshape(cout, 9 * cin_pad), bias[:, None]


@jax.jit
def inception2_forward(x_nchw, params):
    # TODO(synk): pool_type='max' branch not implemented; module default 'avg' is used.
    N, Cin, H, W = x_nchw.shape
    M = H * W
    HALO = max(128, _round_up(W + 1, 128))           # lane-aligned halo, any W

    x = x_nchw.reshape(N, Cin, M).astype(jnp.float32)   # free reshape, no transpose

    # ---- fold BN and merge the shared-input 1x1 convs (b1 | b2a;b3a | b5/9) ----
    w_b1, bias_b1 = _w1x1(params["b1"])
    w_b2a, bias_b2a = _w1x1(params["b2a"])
    w_b3a, bias_b3a = _w1x1(params["b3a"])
    w_b5, bias_b5 = _w1x1(params["b5"])
    w_b5 = w_b5 / 9.0            # avgpool(3,1,1) count_include_pad divisor folded

    n1x1, n3x3red, n5x5red = w_b1.shape[0], w_b2a.shape[0], w_b3a.shape[0]
    pool_planes = w_b5.shape[0]
    nred = n3x3red + n5x5red
    off2 = _round8(n1x1)
    nred_p = _round8(nred)
    off3 = off2 + nred_p
    C1 = off3 + _round8(pool_planes)

    w1 = jnp.zeros((C1, Cin), jnp.float32)
    w1 = w1.at[0:n1x1].set(w_b1)
    w1 = w1.at[off2:off2 + n3x3red].set(w_b2a)
    w1 = w1.at[off2 + n3x3red:off2 + nred].set(w_b3a)
    w1 = w1.at[off3:off3 + pool_planes].set(w_b5)
    b12 = jnp.zeros((off3, 1), jnp.float32)
    b12 = b12.at[0:n1x1].set(bias_b1)
    b12 = b12.at[off2:off2 + n3x3red].set(bias_b2a)
    b12 = b12.at[off2 + n3x3red:off2 + nred].set(bias_b3a)

    # ---- fused 3x3: branch-2 conv and branch-3 first conv (block-diagonal) ----
    w2b_s, bias_b2b = _w3x3_stacked(params["b2b"], nred_p, 0)
    w3b_s, bias_b3b = _w3x3_stacked(params["b3b"], nred_p, n3x3red)
    n3x3, n5x5 = w2b_s.shape[0], w3b_s.shape[0]
    off_t3b = _round8(n3x3)
    n5x5_p = _round8(n5x5)
    rows23 = off_t3b + n5x5_p
    w23 = jnp.zeros((rows23, 9 * nred_p), jnp.float32)
    w23 = w23.at[0:n3x3].set(w2b_s)
    w23 = w23.at[off_t3b:off_t3b + n5x5].set(w3b_s)
    b23 = jnp.zeros((rows23, 1), jnp.float32)
    b23 = b23.at[0:n3x3].set(bias_b2b)
    b23 = b23.at[off_t3b:off_t3b + n5x5].set(bias_b3b)

    # ---- branch-3 second 3x3 ----
    w3c, b3c = _w3x3_stacked(params["b3c"], n5x5_p, 0)

    ctot = n1x1 + n3x3 + n5x5 + pool_planes

    # ---- dx = +/-1 boundary masks (dy handled by the zero halo) ----
    xs = jnp.arange(M, dtype=jnp.int32) % W
    masks = jnp.stack([(xs > 0).astype(jnp.float32),
                       (xs < W - 1).astype(jnp.float32)])        # (2, M)

    cmax_halo = max(nred_p, n5x5_p, _round8(pool_planes))
    cstack = max(nred_p, n5x5_p)

    kernel = _make_kernel(H, W, HALO, n1x1, n3x3, n5x5, pool_planes,
                          off2, off3, nred_p, n5x5_p, off_t3b)

    def resident(shape):
        return pl.BlockSpec(shape, lambda n: (0,) * len(shape))

    weight_elems = int(w1.size + b12.size + w23.size + b23.size + w3c.size
                       + b3c.size + bias_b5.size + masks.size)
    flops = 2 * N * M * (C1 * Cin + rows23 * 9 * nred_p + n5x5 * 9 * n5x5_p) \
        + 12 * N * M * (nred_p + n5x5_p + pool_planes)
    bytes_accessed = 4 * (N * Cin * M + N * ctot * M + weight_elems)
    vmem_est = 4 * (2 * Cin * M + 2 * ctot * M + cmax_halo * (M + 2 * HALO)
                    + 9 * cstack * M + weight_elems) + (1 << 20)

    out = pl.pallas_call(
        kernel,
        grid=(N,),
        in_specs=[
            pl.BlockSpec((None, Cin, M), lambda n: (n, 0, 0)),   # per-image input
            resident(masks.shape),
            resident(w1.shape), resident(b12.shape),
            resident(w23.shape), resident(b23.shape),
            resident(w3c.shape), resident(b3c.shape),
            resident(bias_b5.shape),
        ],
        out_specs=pl.BlockSpec((None, ctot, M), lambda n: (n, 0, 0)),
        out_shape=jax.ShapeDtypeStruct((N, ctot, M), jnp.float32),
        scratch_shapes=[pltpu.VMEM((cmax_halo, M + 2 * HALO), jnp.float32),
                        pltpu.VMEM((9 * cstack, M), jnp.float32)],
        compiler_params=pltpu.CompilerParams(
            dimension_semantics=("parallel",),
            vmem_limit_bytes=int(min(max(2 * vmem_est, 32 << 20), 64 << 20))),
        cost_estimate=pl.CostEstimate(flops=int(flops), transcendentals=0,
                                      bytes_accessed=int(bytes_accessed)),
    )(x, masks, w1, b12, w23, b23, w3c, b3c, bias_b5)

    # (N, Ctot, H*W) -> NCHW, free reshape (no transpose).
    return out.reshape(N, ctot, H, W)


# ---------------------------- parameter setup ------------------------------ #
def make_conv_bn(key, cin, cout, ksize):
    k1, k2, k3, k4, k5, k6 = jax.random.split(key, 6)
    return dict(
        w=0.1 * jax.random.normal(k1, (cout, cin, ksize, ksize), jnp.float32),
        b=0.1 * jax.random.normal(k2, (cout,), jnp.float32),
        gamma=1.0 + 0.1 * jax.random.normal(k3, (cout,), jnp.float32),
        beta=0.1 * jax.random.normal(k4, (cout,), jnp.float32),
        mean=0.1 * jax.random.normal(k5, (cout,), jnp.float32),
        var=jax.random.uniform(k6, (cout,), jnp.float32, minval=0.5, maxval=1.5),
    )


def make_params(key, in_planes, n1x1, n3x3red, n3x3, n5x5red, n5x5, pool_planes):
    keys = jax.random.split(key, 7)
    return dict(
        b1=make_conv_bn(keys[0], in_planes, n1x1, 1),
        b2a=make_conv_bn(keys[1], in_planes, n3x3red, 1),
        b2b=make_conv_bn(keys[2], n3x3red, n3x3, 3),
        b3a=make_conv_bn(keys[3], in_planes, n5x5red, 1),
        b3b=make_conv_bn(keys[4], n5x5red, n5x5, 3),
        b3c=make_conv_bn(keys[5], n5x5, n5x5, 3),
        b5=make_conv_bn(keys[6], in_planes, pool_planes, 1),
    )


# ------------------------- pure-JAX reference check ------------------------ #
def _conv_bn_relu_ref(x, p, pad):
    out = jax.lax.conv_general_dilated(
        x, p["w"], window_strides=(1, 1), padding=[(pad, pad), (pad, pad)],
        dimension_numbers=("NCHW", "OIHW", "NCHW"))
    out = out + p["b"][None, :, None, None]
    out = (out - p["mean"][None, :, None, None]) / jnp.sqrt(
        p["var"][None, :, None, None] + BN_EPS)
    out = out * p["gamma"][None, :, None, None] + p["beta"][None, :, None, None]
    return jnp.maximum(out, 0.0)


def inception2_ref(x, params):
    y1 = _conv_bn_relu_ref(x, params["b1"], 0)
    y2 = _conv_bn_relu_ref(_conv_bn_relu_ref(x, params["b2a"], 0), params["b2b"], 1)
    y3 = _conv_bn_relu_ref(
        _conv_bn_relu_ref(_conv_bn_relu_ref(x, params["b3a"], 0), params["b3b"], 1),
        params["b3c"], 1)
    pooled = jax.lax.reduce_window(
        x, 0.0, jax.lax.add, (1, 1, 3, 3), (1, 1, 1, 1),
        [(0, 0), (0, 0), (1, 1), (1, 1)]) / 9.0
    y4 = _conv_bn_relu_ref(pooled, params["b5"], 0)
    return jnp.concatenate([y1, y2, y3, y4], axis=1)


# ----------------------------------- main ---------------------------------- #
if __name__ == "__main__":
    key = jax.random.PRNGKey(0)
    kx, kp = jax.random.split(key)

    # Inception_2(in_planes=4, n1x1=8, n3x3red=4, n3x3=8, n5x5red=4, n5x5=8,
    #             pool_planes=8, pool_type='avg')
    in_planes, n1x1, n3x3red, n3x3, n5x5red, n5x5, pool_planes = 4, 8, 4, 8, 4, 8, 8
    N, H, W = 2, 16, 16

    x = jax.random.normal(kx, (N, in_planes, H, W), jnp.float32)
    params = make_params(kp, in_planes, n1x1, n3x3red, n3x3, n5x5red, n5x5,
                         pool_planes)

    out = jax.block_until_ready(inception2_forward(x, params))
    expected = jax.block_until_ready(inception2_ref(x, params))

    assert out.shape == (N, n1x1 + n3x3 + n5x5 + pool_planes, H, W), out.shape
    max_err = float(jnp.max(jnp.abs(out - expected)))
    assert jnp.allclose(out, expected, atol=1e-3, rtol=1e-3), max_err

    print("KERNEL_OK")
</pallas_src>

<mosaic_0001>
module attributes {stable_mosaic.version = 11 : i64} {
  func.func @kernel(%arg0: i32, %arg1: memref<1x4x256xf32, #tpu.memory_space<vmem>>, %arg2: memref<2x256xf32, #tpu.memory_space<vmem>>, %arg3: memref<24x4xf32, #tpu.memory_space<vmem>>, %arg4: memref<16x1xf32, #tpu.memory_space<vmem>>, %arg5: memref<16x72xf32, #tpu.memory_space<vmem>>, %arg6: memref<16x1xf32, #tpu.memory_space<vmem>>, %arg7: memref<8x72xf32, #tpu.memory_space<vmem>>, %arg8: memref<8x1xf32, #tpu.memory_space<vmem>>, %arg9: memref<8x1xf32, #tpu.memory_space<vmem>>, %arg10: memref<1x32x256xf32, #tpu.memory_space<vmem>>, %arg11: memref<8x512xf32, #tpu.memory_space<vmem>>, %arg12: memref<72x256xf32, #tpu.memory_space<vmem>>) attributes {dimension_semantics = [#tpu.dimension_semantics<parallel>], iteration_bounds = array<i64: 2>, scalar_prefetch = 0 : i64, scratch_operands = 2 : i64, tpu.core_type = #tpu.core_type<tc>, window_params = [{transform_indices = @transform_0, window_bounds = array<i64: 1, 4, 256>}, {pipeline_mode = #tpu.pipeline_mode<synchronous>, transform_indices = @transform_1, window_bounds = array<i64: 2, 256>}, {pipeline_mode = #tpu.pipeline_mode<synchronous>, transform_indices = @transform_2, window_bounds = array<i64: 24, 4>}, {pipeline_mode = #tpu.pipeline_mode<synchronous>, transform_indices = @transform_3, window_bounds = array<i64: 16, 1>}, {pipeline_mode = #tpu.pipeline_mode<synchronous>, transform_indices = @transform_4, window_bounds = array<i64: 16, 72>}, {pipeline_mode = #tpu.pipeline_mode<synchronous>, transform_indices = @transform_5, window_bounds = array<i64: 16, 1>}, {pipeline_mode = #tpu.pipeline_mode<synchronous>, transform_indices = @transform_6, window_bounds = array<i64: 8, 72>}, {pipeline_mode = #tpu.pipeline_mode<synchronous>, transform_indices = @transform_7, window_bounds = array<i64: 8, 1>}, {pipeline_mode = #tpu.pipeline_mode<synchronous>, transform_indices = @transform_8, window_bounds = array<i64: 8, 1>}, {transform_indices = @transform_9, window_bounds = array<i64: 1, 32, 256>}]} {
    %cst = arith.constant 0.000000e+00 : f32
    %0 = vector.broadcast %cst : f32 to vector<8x128xf32>
    %c0 = arith.constant 0 : index
    %c0_0 = arith.constant 0 : index
    %1 = vector.load %arg11[%c0, %c0_0] : memref<8x512xf32, #tpu.memory_space<vmem>>, vector<8x128xf32>
    tpu.vector_store %arg11[%c0, %c0_0], %0 {strides = array<i32>} : memref<8x512xf32, #tpu.memory_space<vmem>>, vector<8x128xf32>,
    %c0_1 = arith.constant 0 : index
    %c384 = arith.constant 384 : index
    %2 = vector.load %arg11[%c0_1, %c384] : memref<8x512xf32, #tpu.memory_space<vmem>>, vector<8x128xf32>
    tpu.vector_store %arg11[%c0_1, %c384], %0 {strides = array<i32>} : memref<8x512xf32, #tpu.memory_space<vmem>>, vector<8x128xf32>,
    %c0_2 = arith.constant 0 : index
    %c0_3 = arith.constant 0 : index
    %3 = vector.load %arg2[%c0_2, %c0_3] : memref<2x256xf32, #tpu.memory_space<vmem>>, vector<1x256xf32>
    %c1 = arith.constant 1 : index
    %c0_4 = arith.constant 0 : index
    %4 = vector.load %arg2[%c1, %c0_4] : memref<2x256xf32, #tpu.memory_space<vmem>>, vector<1x256xf32>
    %c0_5 = arith.constant 0 : index
    %c0_6 = arith.constant 0 : index
    %c0_7 = arith.constant 0 : index
    %5 = vector.load %arg1[%c0_5, %c0_6, %c0_7] : memref<1x4x256xf32, #tpu.memory_space<vmem>>, vector<1x4x256xf32>
    %6 = vector.shape_cast %5 : vector<1x4x256xf32> to vector<4x256xf32>
    %c0_8 = arith.constant 0 : index
    %c0_9 = arith.constant 0 : index
    %7 = vector.load %arg3[%c0_8, %c0_9] : memref<24x4xf32, #tpu.memory_space<vmem>>, vector<24x4xf32>
    %cst_10 = arith.constant dense<0.000000e+00> : vector<24x256xf32>
    %8 = tpu.matmul %7, %6, %cst_10 {dimension_numbers = #tpu.dot_dimension_numbers<[1], [0], [0], [1], [0, 0, 1, 1], [], []>} : vector<24x4xf32>, vector<4x256xf32>, vector<24x256xf32> -> vector<24x256xf32>
    %9 = vector.extract_strided_slice %8 {offsets = [0, 0], sizes = [16, 256], strides = [1, 1]} : vector<24x256xf32> to vector<16x256xf32>
    %c0_11 = arith.constant 0 : index
    %c0_12 = arith.constant 0 : index
    %10 = vector.load %arg4[%c0_11, %c0_12] : memref<16x1xf32, #tpu.memory_space<vmem>>, vector<16x1xf32>
    %11 = vector.broadcast %10 : vector<16x1xf32> to vector<16x256xf32>
    %12 = arith.addf %9, %11 : vector<16x256xf32>
    %cst_13 = arith.constant 0.000000e+00 : f32
    %13 = vector.broadcast %cst_13 : f32 to vector<16x256xf32>
    %14 = arith.maximumf %12, %13 : vector<16x256xf32>
    %15 = vector.extract_strided_slice %14 {offsets = [0, 0], sizes = [8, 256], strides = [1, 1]} : vector<16x256xf32> to vector<8x256xf32>
    %c0_14 = arith.constant 0 : index
    %c0_15 = arith.constant 0 : index
    %c0_16 = arith.constant 0 : index
    %16 = vector.load %arg10[%c0_14, %c0_15, %c0_16] : memref<1x32x256xf32, #tpu.memory_space<vmem>>, vector<1x8x256xf32>
    %17 = vector.shape_cast %16 : vector<1x8x256xf32> to vector<8x256xf32>
    %18 = vector.shape_cast %15 : vector<8x256xf32> to vector<1x8x256xf32>
    tpu.vector_store %arg10[%c0_14, %c0_15, %c0_16], %18 {strides = array<i32>} : memref<1x32x256xf32, #tpu.memory_space<vmem>>, vector<1x8x256xf32>,
    %19 = vector.extract_strided_slice %14 {offsets = [8, 0], sizes = [8, 256], strides = [1, 1]} : vector<16x256xf32> to vector<8x256xf32>
    %20 = vector.extract_strided_slice %8 {offsets = [16, 0], sizes = [8, 256], strides = [1, 1]} : vector<24x256xf32> to vector<8x256xf32>
    %c0_17 = arith.constant 0 : index
    %c128 = arith.constant 128 : index
    %21 = vector.load %arg11[%c0_17, %c128] : memref<8x512xf32, #tpu.memory_space<vmem>>, vector<8x256xf32>
    tpu.vector_store %arg11[%c0_17, %c128], %19 {strides = array<i32>} : memref<8x512xf32, #tpu.memory_space<vmem>>, vector<8x256xf32>,
    %c0_18 = arith.constant 0 : index
    %c111 = arith.constant 111 : index
    %22 = vector.load %arg11[%c0_18, %c111] : memref<8x512xf32, #tpu.memory_space<vmem>>, vector<8x256xf32>
    %23 = vector.broadcast %3 : vector<1x256xf32> to vector<8x256xf32>
    %24 = arith.mulf %22, %23 : vector<8x256xf32>
    %c0_19 = arith.constant 0 : index
    %c0_20 = arith.constant 0 : index
    %25 = vector.load %arg12[%c0_19, %c0_20] : memref<72x256xf32, #tpu.memory_space<vmem>>, vector<8x256xf32>
    tpu.vector_store %arg12[%c0_19, %c0_20], %24 {strides = array<i32>} : memref<72x256xf32, #tpu.memory_space<vmem>>, vector<8x256xf32>,
    %c0_21 = arith.constant 0 : index
    %c112 = arith.constant 112 : index
    %26 = vector.load %arg11[%c0_21, %c112] : memref<8x512xf32, #tpu.memory_space<vmem>>, vector<8x256xf32>
    %c8 = arith.constant 8 : index
    %c0_22 = arith.constant 0 : index
    %27 = vector.load %arg12[%c8, %c0_22] : memref<72x256xf32, #tpu.memory_space<vmem>>, vector<8x256xf32>
    tpu.vector_store %arg12[%c8, %c0_22], %26 {strides = array<i32>} : memref<72x256xf32, #tpu.memory_space<vmem>>, vector<8x256xf32>,
    %c0_23 = arith.constant 0 : index
    %c113 = arith.constant 113 : index
    %28 = vector.load %arg11[%c0_23, %c113] : memref<8x512xf32, #tpu.memory_space<vmem>>, vector<8x256xf32>
    %29 = vector.broadcast %4 : vector<1x256xf32> to vector<8x256xf32>
    %30 = arith.mulf %28, %29 : vector<8x256xf32>
    %c16 = arith.constant 16 : index
    %c0_24 = arith.constant 0 : index
    %31 = vector.load %arg12[%c16, %c0_24] : memref<72x256xf32, #tpu.memory_space<vmem>>, vector<8x256xf32>
    tpu.vector_store %arg12[%c16, %c0_24], %30 {strides = array<i32>} : memref<72x256xf32, #tpu.memory_space<vmem>>, vector<8x256xf32>,
    %c0_25 = arith.constant 0 : index
    %c127 = arith.constant 127 : index
    %32 = vector.load %arg11[%c0_25, %c127] : memref<8x512xf32, #tpu.memory_space<vmem>>, vector<8x256xf32>
    %33 = vector.broadcast %3 : vector<1x256xf32> to vector<8x256xf32>
    %34 = arith.mulf %32, %33 : vector<8x256xf32>
    %c24 = arith.constant 24 : index
    %c0_26 = arith.constant 0 : index
    %35 = vector.load %arg12[%c24, %c0_26] : memref<72x256xf32, #tpu.memory_space<vmem>>, vector<8x256xf32>
    tpu.vector_store %arg12[%c24, %c0_26], %34 {strides = array<i32>} : memref<72x256xf32, #tpu.memory_space<vmem>>, vector<8x256xf32>,
    %c32 = arith.constant 32 : index
    %c0_27 = arith.constant 0 : index
    %36 = vector.load %arg12[%c32, %c0_27] : memref<72x256xf32, #tpu.memory_space<vmem>>, vector<8x256xf32>
    tpu.vector_store %arg12[%c32, %c0_27], %19 {strides = array<i32>} : memref<72x256xf32, #tpu.memory_space<vmem>>, vector<8x256xf32>,
    %c0_28 = arith.constant 0 : index
    %c129 = arith.constant 129 : index
    %37 = vector.load %arg11[%c0_28, %c129] : memref<8x512xf32, #tpu.memory_space<vmem>>, vector<8x256xf32>
    %38 = vector.broadcast %4 : vector<1x256xf32> to vector<8x256xf32>
    %39 = arith.mulf %37, %38 : vector<8x256xf32>
    %c40 = arith.constant 40 : index
    %c0_29 = arith.constant 0 : index
    %40 = vector.load %arg12[%c40, %c0_29] : memref<72x256xf32, #tpu.memory_space<vmem>>, vector<8x256xf32>
    tpu.vector_store %arg12[%c40, %c0_29], %39 {strides = array<i32>} : memref<72x256xf32, #tpu.memory_space<vmem>>, vector<8x256xf32>,
    %c0_30 = arith.constant 0 : index
    %c143 = arith.constant 143 : index
    %41 = vector.load %arg11[%c0_30, %c143] : memref<8x512xf32, #tpu.memory_space<vmem>>, vector<8x256xf32>
    %42 = vector.broadcast %3 : vector<1x256xf32> to vector<8x256xf32>
    %43 = arith.mulf %41, %42 : vector<8x256xf32>
    %c48 = arith.constant 48 : index
    %c0_31 = arith.constant 0 : index
    %44 = vector.load %arg12[%c48, %c0_31] : memref<72x256xf32, #tpu.memory_space<vmem>>, vector<8x256xf32>
    tpu.vector_store %arg12[%c48, %c0_31], %43 {strides = array<i32>} : memref<72x256xf32, #tpu.memory_space<vmem>>, vector<8x256xf32>,
    %c0_32 = arith.constant 0 : index
    %c144 = arith.constant 144 : index
    %45 = vector.load %arg11[%c0_32, %c144] : memref<8x512xf32, #tpu.memory_space<vmem>>, vector<8x256xf32>
    %c56 = arith.constant 56 : index
    %c0_33 = arith.constant 0 : index
    %46 = vector.load %arg12[%c56, %c0_33] : memref<72x256xf32, #tpu.memory_space<vmem>>, vector<8x256xf32>
    tpu.vector_store %arg12[%c56, %c0_33], %45 {strides = array<i32>} : memref<72x256xf32, #tpu.memory_space<vmem>>, vector<8x256xf32>,
    %c0_34 = arith.constant 0 : index
    %c145 = arith.constant 145 : index
    %47 = vector.load %arg11[%c0_34, %c145] : memref<8x512xf32, #tpu.memory_space<vmem>>, vector<8x256xf32>
    %48 = vector.broadcast %4 : vector<1x256xf32> to vector<8x256xf32>
    %49 = arith.mulf %47, %48 : vector<8x256xf32>
    %c64 = arith.constant 64 : index
    %c0_35 = arith.constant 0 : index
    %50 = vector.load %arg12[%c64, %c0_35] : memref<72x256xf32, #tpu.memory_space<vmem>>, vector<8x256xf32>
    tpu.vector_store %arg12[%c64, %c0_35], %49 {strides = array<i32>} : memref<72x256xf32, #tpu.memory_space<vmem>>, vector<8x256xf32>,
    %c0_36 = arith.constant 0 : index
    %c0_37 = arith.constant 0 : index
    %51 = vector.load %arg5[%c0_36, %c0_37] : memref<16x72xf32, #tpu.memory_space<vmem>>, vector<16x72xf32>
    %c0_38 = arith.constant 0 : index
    %c0_39 = arith.constant 0 : index
    %52 = vector.load %arg12[%c0_38, %c0_39] : memref<72x256xf32, #tpu.memory_space<vmem>>, vector<72x256xf32>
    %cst_40 = arith.constant dense<0.000000e+00> : vector<16x256xf32>
    %53 = tpu.matmul %51, %52, %cst_40 {dimension_numbers = #tpu.dot_dimension_numbers<[1], [0], [0], [1], [0, 0, 1, 1], [], []>} : vector<16x72xf32>, vector<72x256xf32>, vector<16x256xf32> -> vector<16x256xf32>
    %c0_41 = arith.constant 0 : index
    %c0_42 = arith.constant 0 : index
    %54 = vector.load %arg6[%c0_41, %c0_42] : memref<16x1xf32, #tpu.memory_space<vmem>>, vector<16x1xf32>
    %55 = vector.broadcast %54 : vector<16x1xf32> to vector<16x256xf32>
    %56 = arith.addf %53, %55 : vector<16x256xf32>
    %cst_43 = arith.constant 0.000000e+00 : f32
    %57 = vector.broadcast %cst_43 : f32 to vector<16x256xf32>
    %58 = arith.maximumf %56, %57 : vector<16x256xf32>
    %59 = vector.extract_strided_slice %58 {offsets = [0, 0], sizes = [8, 256], strides = [1, 1]} : vector<16x256xf32> to vector<8x256xf32>
    %c0_44 = arith.constant 0 : index
    %c8_45 = arith.constant 8 : index
    %c0_46 = arith.constant 0 : index
    %60 = vector.load %arg10[%c0_44, %c8_45, %c0_46] : memref<1x32x256xf32, #tpu.memory_space<vmem>>, vector<1x8x256xf32>
    %61 = vector.shape_cast %60 : vector<1x8x256xf32> to vector<8x256xf32>
    %62 = vector.shape_cast %59 : vector<8x256xf32> to vector<1x8x256xf32>
    tpu.vector_store %arg10[%c0_44, %c8_45, %c0_46], %62 {strides = array<i32>} : memref<1x32x256xf32, #tpu.memory_space<vmem>>, vector<1x8x256xf32>,
    %63 = vector.extract_strided_slice %58 {offsets = [8, 0], sizes = [8, 256], strides = [1, 1]} : vector<16x256xf32> to vector<8x256xf32>
    %c0_47 = arith.constant 0 : index
    %c128_48 = arith.constant 128 : index
    %64 = vector.load %arg11[%c0_47, %c128_48] : memref<8x512xf32, #tpu.memory_space<vmem>>, vector<8x256xf32>
    tpu.vector_store %arg11[%c0_47, %c128_48], %63 {strides = array<i32>} : memref<8x512xf32, #tpu.memory_space<vmem>>, vector<8x256xf32>,
    %c0_49 = arith.constant 0 : index
    %c111_50 = arith.constant 111 : index
    %65 = vector.load %arg11[%c0_49, %c111_50] : memref<8x512xf32, #tpu.memory_space<vmem>>, vector<8x256xf32>
    %66 = vector.broadcast %3 : vector<1x256xf32> to vector<8x256xf32>
    %67 = arith.mulf %65, %66 : vector<8x256xf32>
    %c0_51 = arith.constant 0 : index
    %c0_52 = arith.constant 0 : index
    %68 = vector.load %arg12[%c0_51, %c0_52] : memref<72x256xf32, #tpu.memory_space<vmem>>, vector<8x256xf32>
    tpu.vector_store %arg12[%c0_51, %c0_52], %67 {strides = array<i32>} : memref<72x256xf32, #tpu.memory_space<vmem>>, vector<8x256xf32>,
    %c0_53 = arith.constant 0 : index
    %c112_54 = arith.constant 112 : index
    %69 = vector.load %arg11[%c0_53, %c112_54] : memref<8x512xf32, #tpu.memory_space<vmem>>, vector<8x256xf32>
    %c8_55 = arith.constant 8 : index
    %c0_56 = arith.constant 0 : index
    %70 = vector.load %arg12[%c8_55, %c0_56] : memref<72x256xf32, #tpu.memory_space<vmem>>, vector<8x256xf32>
    tpu.vector_store %arg12[%c8_55, %c0_56], %69 {strides = array<i32>} : memref<72x256xf32, #tpu.memory_space<vmem>>, vector<8x256xf32>,
    %c0_57 = arith.constant 0 : index
    %c113_58 = arith.constant 113 : index
    %71 = vector.load %arg11[%c0_57, %c113_58] : memref<8x512xf32, #tpu.memory_space<vmem>>, vector<8x256xf32>
    %72 = vector.broadcast %4 : vector<1x256xf32> to vector<8x256xf32>
    %73 = arith.mulf %71, %72 : vector<8x256xf32>
    %c16_59 = arith.constant 16 : index
    %c0_60 = arith.constant 0 : index
    %74 = vector.load %arg12[%c16_59, %c0_60] : memref<72x256xf32, #tpu.memory_space<vmem>>, vector<8x256xf32>
    tpu.vector_store %arg12[%c16_59, %c0_60], %73 {strides = array<i32>} : memref<72x256xf32, #tpu.memory_space<vmem>>, vector<8x256xf32>,
    %c0_61 = arith.constant 0 : index
    %c127_62 = arith.constant 127 : index
    %75 = vector.load %arg11[%c0_61, %c127_62] : memref<8x512xf32, #tpu.memory_space<vmem>>, vector<8x256xf32>
    %76 = vector.broadcast %3 : vector<1x256xf32> to vector<8x256xf32>
    %77 = arith.mulf %75, %76 : vector<8x256xf32>
    %c24_63 = arith.constant 24 : index
    %c0_64 = arith.constant 0 : index
    %78 = vector.load %arg12[%c24_63, %c0_64] : memref<72x256xf32, #tpu.memory_space<vmem>>, vector<8x256xf32>
    tpu.vector_store %arg12[%c24_63, %c0_64], %77 {strides = array<i32>} : memref<72x256xf32, #tpu.memory_space<vmem>>, vector<8x256xf32>,
    %c32_65 = arith.constant 32 : index
    %c0_66 = arith.constant 0 : index
    %79 = vector.load %arg12[%c32_65, %c0_66] : memref<72x256xf32, #tpu.memory_space<vmem>>, vector<8x256xf32>
    tpu.vector_store %arg12[%c32_65, %c0_66], %63 {strides = array<i32>} : memref<72x256xf32, #tpu.memory_space<vmem>>, vector<8x256xf32>,
    %c0_67 = arith.constant 0 : index
    %c129_68 = arith.constant 129 : index
    %80 = vector.load %arg11[%c0_67, %c129_68] : memref<8x512xf32, #tpu.memory_space<vmem>>, vector<8x256xf32>
    %81 = vector.broadcast %4 : vector<1x256xf32> to vector<8x256xf32>
    %82 = arith.mulf %80, %81 : vector<8x256xf32>
    %c40_69 = arith.constant 40 : index
    %c0_70 = arith.constant 0 : index
    %83 = vector.load %arg12[%c40_69, %c0_70] : memref<72x256xf32, #tpu.memory_space<vmem>>, vector<8x256xf32>
    tpu.vector_store %arg12[%c40_69, %c0_70], %82 {strides = array<i32>} : memref<72x256xf32, #tpu.memory_space<vmem>>, vector<8x256xf32>,
    %c0_71 = arith.constant 0 : index
    %c143_72 = arith.constant 143 : index
    %84 = vector.load %arg11[%c0_71, %c143_72] : memref<8x512xf32, #tpu.memory_space<vmem>>, vector<8x256xf32>
    %85 = vector.broadcast %3 : vector<1x256xf32> to vector<8x256xf32>
    %86 = arith.mulf %84, %85 : vector<8x256xf32>
    %c48_73 = arith.constant 48 : index
    %c0_74 = arith.constant 0 : index
    %87 = vector.load %arg12[%c48_73, %c0_74] : memref<72x256xf32, #tpu.memory_space<vmem>>, vector<8x256xf32>
    tpu.vector_store %arg12[%c48_73, %c0_74], %86 {strides = array<i32>} : memref<72x256xf32, #tpu.memory_space<vmem>>, vector<8x256xf32>,
    %c0_75 = arith.constant 0 : index
    %c144_76 = arith.constant 144 : index
    %88 = vector.load %arg11[%c0_75, %c144_76] : memref<8x512xf32, #tpu.memory_space<vmem>>, vector<8x256xf32>
    %c56_77 = arith.constant 56 : index
    %c0_78 = arith.constant 0 : index
    %89 = vector.load %arg12[%c56_77, %c0_78] : memref<72x256xf32, #tpu.memory_space<vmem>>, vector<8x256xf32>
    tpu.vector_store %arg12[%c56_77, %c0_78], %88 {strides = array<i32>} : memref<72x256xf32, #tpu.memory_space<vmem>>, vector<8x256xf32>,
    %c0_79 = arith.constant 0 : index
    %c145_80 = arith.constant 145 : index
    %90 = vector.load %arg11[%c0_79, %c145_80] : memref<8x512xf32, #tpu.memory_space<vmem>>, vector<8x256xf32>
    %91 = vector.broadcast %4 : vector<1x256xf32> to vector<8x256xf32>
    %92 = arith.mulf %90, %91 : vector<8x256xf32>
    %c64_81 = arith.constant 64 : index
    %c0_82 = arith.constant 0 : index
    %93 = vector.load %arg12[%c64_81, %c0_82] : memref<72x256xf32, #tpu.memory_space<vmem>>, vector<8x256xf32>
    tpu.vector_store %arg12[%c64_81, %c0_82], %92 {strides = array<i32>} : memref<72x256xf32, #tpu.memory_space<vmem>>, vector<8x256xf32>,
    %c0_83 = arith.constant 0 : index
    %c0_84 = arith.constant 0 : index
    %94 = vector.load %arg7[%c0_83, %c0_84] : memref<8x72xf32, #tpu.memory_space<vmem>>, vector<8x72xf32>
    %c0_85 = arith.constant 0 : index
    %c0_86 = arith.constant 0 : index
    %95 = vector.load %arg12[%c0_85, %c0_86] : memref<72x256xf32, #tpu.memory_space<vmem>>, vector<72x256xf32>
    %cst_87 = arith.constant dense<0.000000e+00> : vector<8x256xf32>
    %96 = tpu.matmul %94, %95, %cst_87 {dimension_numbers = #tpu.dot_dimension_numbers<[1], [0], [0], [1], [0, 0, 1, 1], [], []>} : vector<8x72xf32>, vector<72x256xf32>, vector<8x256xf32> -> vector<8x256xf32>
    %c0_88 = arith.constant 0 : index
    %c0_89 = arith.constant 0 : index
    %97 = vector.load %arg8[%c0_88, %c0_89] : memref<8x1xf32, #tpu.memory_space<vmem>>, vector<8x1xf32>
    %98 = vector.broadcast %97 : vector<8x1xf32> to vector<8x256xf32>
    %99 = arith.addf %96, %98 : vector<8x256xf32>
    %cst_90 = arith.constant 0.000000e+00 : f32
    %100 = vector.broadcast %cst_90 : f32 to vector<8x256xf32>
    %101 = arith.maximumf %99, %100 : vector<8x256xf32>
    %c0_91 = arith.constant 0 : index
    %c16_92 = arith.constant 16 : index
    %c0_93 = arith.constant 0 : index
    %102 = vector.load %arg10[%c0_91, %c16_92, %c0_93] : memref<1x32x256xf32, #tpu.memory_space<vmem>>, vector<1x8x256xf32>
    %103 = vector.shape_cast %102 : vector<1x8x256xf32> to vector<8x256xf32>
    %104 = vector.shape_cast %101 : vector<8x256xf32> to vector<1x8x256xf32>
    tpu.vector_store %arg10[%c0_91, %c16_92, %c0_93], %104 {strides = array<i32>} : memref<1x32x256xf32, #tpu.memory_space<vmem>>, vector<1x8x256xf32>,
    %c0_94 = arith.constant 0 : index
    %c128_95 = arith.constant 128 : index
    %105 = vector.load %arg11[%c0_94, %c128_95] : memref<8x512xf32, #tpu.memory_space<vmem>>, vector<8x256xf32>
    tpu.vector_store %arg11[%c0_94, %c128_95], %20 {strides = array<i32>} : memref<8x512xf32, #tpu.memory_space<vmem>>, vector<8x256xf32>,
    %c0_96 = arith.constant 0 : index
    %c127_97 = arith.constant 127 : index
    %106 = vector.load %arg11[%c0_96, %c127_97] : memref<8x512xf32, #tpu.memory_space<vmem>>, vector<8x256xf32>
    %107 = vector.broadcast %3 : vector<1x256xf32> to vector<8x256xf32>
    %108 = arith.mulf %106, %107 : vector<8x256xf32>
    %109 = arith.addf %20, %108 : vector<8x256xf32>
    %c0_98 = arith.constant 0 : index
    %c129_99 = arith.constant 129 : index
    %110 = vector.load %arg11[%c0_98, %c129_99] : memref<8x512xf32, #tpu.memory_space<vmem>>, vector<8x256xf32>
    %111 = vector.broadcast %4 : vector<1x256xf32> to vector<8x256xf32>
    %112 = arith.mulf %110, %111 : vector<8x256xf32>
    %113 = arith.addf %109, %112 : vector<8x256xf32>
    %c0_100 = arith.constant 0 : index
    %c128_101 = arith.constant 128 : index
    %114 = vector.load %arg11[%c0_100, %c128_101] : memref<8x512xf32, #tpu.memory_space<vmem>>, vector<8x256xf32>
    tpu.vector_store %arg11[%c0_100, %c128_101], %113 {strides = array<i32>} : memref<8x512xf32, #tpu.memory_space<vmem>>, vector<8x256xf32>,
    %c0_102 = arith.constant 0 : index
    %c112_103 = arith.constant 112 : index
    %115 = vector.load %arg11[%c0_102, %c112_103] : memref<8x512xf32, #tpu.memory_space<vmem>>, vector<8x256xf32>
    %116 = arith.addf %113, %115 : vector<8x256xf32>
    %c0_104 = arith.constant 0 : index
    %c144_105 = arith.constant 144 : index
    %117 = vector.load %arg11[%c0_104, %c144_105] : memref<8x512xf32, #tpu.memory_space<vmem>>, vector<8x256xf32>
    %118 = arith.addf %116, %117 : vector<8x256xf32>
    %c0_106 = arith.constant 0 : index
    %c0_107 = arith.constant 0 : index
    %119 = vector.load %arg9[%c0_106, %c0_107] : memref<8x1xf32, #tpu.memory_space<vmem>>, vector<8x1xf32>
    %120 = vector.broadcast %119 : vector<8x1xf32> to vector<8x256xf32>
    %121 = arith.addf %118, %120 : vector<8x256xf32>
    %cst_108 = arith.constant 0.000000e+00 : f32
    %122 = vector.broadcast %cst_108 : f32 to vector<8x256xf32>
    %123 = arith.maximumf %121, %122 : vector<8x256xf32>
    %c0_109 = arith.constant 0 : index
    %c24_110 = arith.constant 24 : index
    %c0_111 = arith.constant 0 : index
    %124 = vector.load %arg10[%c0_109, %c24_110, %c0_111] : memref<1x32x256xf32, #tpu.memory_space<vmem>>, vector<1x8x256xf32>
    %125 = vector.shape_cast %124 : vector<1x8x256xf32> to vector<8x256xf32>
    %126 = vector.shape_cast %123 : vector<8x256xf32> to vector<1x8x256xf32>
    tpu.vector_store %arg10[%c0_109, %c24_110, %c0_111], %126 {strides = array<i32>} : memref<1x32x256xf32, #tpu.memory_space<vmem>>, vector<1x8x256xf32>,
    return
  }
  func.func @transform_0(%arg0: i32) -> (i32, i32, i32) {
    %c0_i32 = arith.constant 0 : i32
    %c0_i32_0 = arith.constant 0 : i32
    %c0_i32_1 = arith.constant 0 : i32
    return %arg0, %c0_i32, %c0_i32_0 : i32, i32, i32
  }
  func.func @transform_1(%arg0: i32) -> (i32, i32) {
    %c0_i32 = arith.constant 0 : i32
    %c0_i32_0 = arith.constant 0 : i32
    %c0_i32_1 = arith.constant 0 : i32
    return %c0_i32, %c0_i32_0 : i32, i32
  }
  func.func @transform_2(%arg0: i32) -> (i32, i32) {
    %c0_i32 = arith.constant 0 : i32
    %c0_i32_0 = arith.constant 0 : i32
    %c0_i32_1 = arith.constant 0 : i32
    return %c0_i32, %c0_i32_0 : i32, i32
  }
  func.func @transform_3(%arg0: i32) -> (i32, i32) {
    %c0_i32 = arith.constant 0 : i32
    %c0_i32_0 = arith.constant 0 : i32
    %c0_i32_1 = arith.constant 0 : i32
    return %c0_i32, %c0_i32_0 : i32, i32
  }
  func.func @transform_4(%arg0: i32) -> (i32, i32) {
    %c0_i32 = arith.constant 0 : i32
    %c0_i32_0 = arith.constant 0 : i32
    %c0_i32_1 = arith.constant 0 : i32
    return %c0_i32, %c0_i32_0 : i32, i32
  }
  func.func @transform_5(%arg0: i32) -> (i32, i32) {
    %c0_i32 = arith.constant 0 : i32
    %c0_i32_0 = arith.constant 0 : i32
    %c0_i32_1 = arith.constant 0 : i32
    return %c0_i32, %c0_i32_0 : i32, i32
  }
  func.func @transform_6(%arg0: i32) -> (i32, i32) {
    %c0_i32 = arith.constant 0 : i32
    %c0_i32_0 = arith.constant 0 : i32
    %c0_i32_1 = arith.constant 0 : i32
    return %c0_i32, %c0_i32_0 : i32, i32
  }
  func.func @transform_7(%arg0: i32) -> (i32, i32) {
    %c0_i32 = arith.constant 0 : i32
    %c0_i32_0 = arith.constant 0 : i32
    %c0_i32_1 = arith.constant 0 : i32
    return %c0_i32, %c0_i32_0 : i32, i32
  }
  func.func @transform_8(%arg0: i32) -> (i32, i32) {
    %c0_i32 = arith.constant 0 : i32
    %c0_i32_0 = arith.constant 0 : i32
    %c0_i32_1 = arith.constant 0 : i32
    return %c0_i32, %c0_i32_0 : i32, i32
  }
  func.func @transform_9(%arg0: i32) -> (i32, i32, i32) {
    %c0_i32 = arith.constant 0 : i32
    %c0_i32_0 = arith.constant 0 : i32
    %c0_i32_1 = arith.constant 0 : i32
    return %arg0, %c0_i32, %c0_i32_0 : i32, i32, i32
  }
}

</mosaic_0001>

<llo_original>
// kernel: inception2_forward.1
$region0: #{inception2_forward.1}
  #allocation0 [shape = 'u32[]', space=smem, size = 0x4, offset = 0x4, fixed_abs, tag = 'smem constant byte address 0x4 - core index']
  #allocation1 [shape = 'u32[144,128]{1,0:T(1,128)}', space=vmem, size = 0x12000, scoped, tag = 'internal scratch']
  #allocation2 [shape = 'f32[8,512]{1,0:T(8,128)}', space=vmem, size = 0x4000, scoped, tag = 'scratch operand']
  #allocation3 [shape = 'f32[72,256]{1,0:T(8,128)}', space=vmem, size = 0x12000, scoped, tag = 'scratch operand']
  %s0 = inlined_call_operand.vmem [shape: f32[2,4,256], index: 0, kind: input, shape index: {}]
  %s1 = inlined_call_operand.vmem [shape: f32[2,256], index: 1, kind: input, shape index: {}]
  %s2 = inlined_call_operand.vmem [shape: f32[24,4], index: 2, kind: input, shape index: {}]
  %s3 = inlined_call_operand.vmem [shape: f32[16,1], index: 3, kind: input, shape index: {}]
  %s4 = inlined_call_operand.vmem [shape: f32[16,72], index: 4, kind: input, shape index: {}]
  %s5 = inlined_call_operand.vmem [shape: f32[16,1], index: 5, kind: input, shape index: {}]
  %s6 = inlined_call_operand.vmem [shape: f32[8,72], index: 6, kind: input, shape index: {}]
  %s7 = inlined_call_operand.vmem [shape: f32[8,1], index: 7, kind: input, shape index: {}]
  %s8 = inlined_call_operand.vmem [shape: f32[8,1], index: 8, kind: input, shape index: {}]
  %s9 = inlined_call_operand.vmem [shape: f32[2,32,256], index: 9, kind: output, shape index: {}]
  %s10 = sld [smem:[#allocation0]]
  $region69: #{inception2_forward.1} parent=0
    _
  %s12 = ssub.s32 1, %s10
  %s13 = scalar_select 0, %s12, %s10
  loop: start=0, step=1, limit=4
  $region2: #{inception2_forward.1} parent=0 // loop_pre_header
    _
  $region3: #{inception2_forward.1} parent=0 // loop_header
    %s15 = sphi 0, %s19
    %p16 = scmp.ge.s32.totalorder %s15, 4
    %s25 = sphi 0, %s27
    %s28 = sphi 0, %s25
    %s29 = sphi 0, %s28
    %s45 = sphi 0, %s29
    %s49 = sphi 0, %s49
    %s51 = sphi 0, %s49
    %s52 = sphi 0, %s51
    %s66 = sphi 0, %s52
    %s70 = sphi 0, %s70
    %s72 = sphi 0, %s70
    %s73 = sphi 0, %s72
    %s87 = sphi 0, %s73
    %s91 = sphi 0, %s91
    %s93 = sphi 0, %s91
    %s94 = sphi 0, %s93
    %s108 = sphi 0, %s94
    %s112 = sphi 0, %s112
    %s114 = sphi 0, %s112
    %s115 = sphi 0, %s114
    %s129 = sphi 0, %s115
    %s133 = sphi 0, %s133
    %s135 = sphi 0, %s133
    %s136 = sphi 0, %s135
    %s150 = sphi 0, %s136
    %s154 = sphi 0, %s154
    %s156 = sphi 0, %s154
    %s157 = sphi 0, %s156
    %s171 = sphi 0, %s157
    %s175 = sphi 0, %s175
    %s177 = sphi 0, %s175
    %s178 = sphi 0, %s177
    %s192 = sphi 0, %s178
    %s196 = sphi 0, %s196
    %s198 = sphi 0, %s196
    %s199 = sphi 0, %s198
    %s213 = sphi 0, %s199
    %s219 = sphi 0, %s221
    %s222 = sphi 0, %s219
    %s223 = sphi 0, %s222
    %s239 = sphi 0, %s223
  $region4: #{inception2_forward.1} parent=0 // loop_header_branch
    %18 = sbr.rel (%p16) target = $region8
  $region5: #{inception2_forward.1} parent=0 // loop_body
    %s20 = ssub.s32 %s15, 1
    %s21 = ssub.s32 %s15, 2
    %s22 = sadd.s32 %s15, 1
    %s23 = ssub.s32 %s15, %s22
    %p24 = scmp.eq.s32.totalorder %s23, 0
    %s26 = sadd.s32 %s25, 1
    %s27 = scalar_select %p24, %s25, %s26
    %p30 = pneg %p24
    %p31 = scmp.eq.s32.totalorder %s15, 1
    %p32 = por %p30, %p31
    %p33 = scmp.ne.s32.totalorder %s25, %s28
    %p34 = scmp.eq.s32.totalorder %s15, 0
    %p35 = por %p33, %p34
    %p36 = scmp.ne.s32.totalorder %s25, %s28
    %p37 = scmp.eq.s32.totalorder %s20, 1
    %p38 = por %p36, %p37
    %p39 = scmp.ne.s32.totalorder %s28, %s29
    %p40 = scmp.eq.s32.totalorder %s20, 0
    %p41 = por %p39, %p40
    %p42 = scmp.ne.s32.totalorder %s28, %s29
    %p43 = scmp.eq.s32.totalorder %s21, 1
    %p44 = por %p42, %p43
    %p46 = scmp.ne.s32.totalorder %s29, %s45
    %p47 = scmp.eq.s32.totalorder %s21, 0
    %p48 = por %p46, %p47
    %s50 = sadd.s32 %s49, 1
    %p53 = scmp.eq.s32.totalorder %s15, 1
    %p54 = scmp.ne.s32.totalorder %s49, %s51
    %p55 = scmp.eq.s32.totalorder %s15, 0
    %p56 = por %p54, %p55
    %p57 = scmp.ne.s32.totalorder %s49, %s51
    %p58 = scmp.eq.s32.totalorder %s20, 1
    %p59 = por %p57, %p58
    %p60 = scmp.ne.s32.totalorder %s51, %s52
    %p61 = scmp.eq.s32.totalorder %s20, 0
    %p62 = por %p60, %p61
    %p63 = scmp.ne.s32.totalorder %s51, %s52
    %p64 = scmp.eq.s32.totalorder %s21, 1
    %p65 = por %p63, %p64
    %p67 = scmp.ne.s32.totalorder %s52, %s66
    %p68 = scmp.eq.s32.totalorder %s21, 0
    %p69 = por %p67, %p68
    %s71 = sadd.s32 %s70, 1
    %p74 = scmp.eq.s32.totalorder %s15, 1
    %p75 = scmp.ne.s32.totalorder %s70, %s72
    %p76 = scmp.eq.s32.totalorder %s15, 0
    %p77 = por %p75, %p76
    %p78 = scmp.ne.s32.totalorder %s70, %s72
    %p79 = scmp.eq.s32.totalorder %s20, 1
    %p80 = por %p78, %p79
    %p81 = scmp.ne.s32.totalorder %s72, %s73
    %p82 = scmp.eq.s32.totalorder %s20, 0
    %p83 = por %p81, %p82
    %p84 = scmp.ne.s32.totalorder %s72, %s73
    %p85 = scmp.eq.s32.totalorder %s21, 1
    %p86 = por %p84, %p85
    %p88 = scmp.ne.s32.totalorder %s73, %s87
    %p89 = scmp.eq.s32.totalorder %s21, 0
    %p90 = por %p88, %p89
    %s92 = sadd.s32 %s91, 1
    %p95 = scmp.eq.s32.totalorder %s15, 1
    %p96 = scmp.ne.s32.totalorder %s91, %s93
    %p97 = scmp.eq.s32.totalorder %s15, 0
    %p98 = por %p96, %p97
    %p99 = scmp.ne.s32.totalorder %s91, %s93
    %p100 = scmp.eq.s32.totalorder %s20, 1
    %p101 = por %p99, %p100
    %p102 = scmp.ne.s32.totalorder %s93, %s94
    %p103 = scmp.eq.s32.totalorder %s20, 0
    %p104 = por %p102, %p103
    %p105 = scmp.ne.s32.totalorder %s93, %s94
    %p106 = scmp.eq.s32.totalorder %s21, 1
    %p107 = por %p105, %p106
    %p109 = scmp.ne.s32.totalorder %s94, %s108
    %p110 = scmp.eq.s32.totalorder %s21, 0
    %p111 = por %p109, %p110
    %s113 = sadd.s32 %s112, 1
    %p116 = scmp.eq.s32.totalorder %s15, 1
    %p117 = scmp.ne.s32.totalorder %s112, %s114
    %p118 = scmp.eq.s32.totalorder %s15, 0
    %p119 = por %p117, %p118
    %p120 = scmp.ne.s32.totalorder %s112, %s114
    %p121 = scmp.eq.s32.totalorder %s20, 1
    %p122 = por %p120, %p121
    %p123 = scmp.ne.s32.totalorder %s114, %s115
    %p124 = scmp.eq.s32.totalorder %s20, 0
    %p125 = por %p123, %p124
    %p126 = scmp.ne.s32.totalorder %s114, %s115
    %p127 = scmp.eq.s32.totalorder %s21, 1
    %p128 = por %p126, %p127
    %p130 = scmp.ne.s32.totalorder %s115, %s129
    %p131 = scmp.eq.s32.totalorder %s21, 0
    %p132 = por %p130, %p131
    %s134 = sadd.s32 %s133, 1
    %p137 = scmp.eq.s32.totalorder %s15, 1
    %p138 = scmp.ne.s32.totalorder %s133, %s135
    %p139 = scmp.eq.s32.totalorder %s15, 0
    %p140 = por %p138, %p139
    %p141 = scmp.ne.s32.totalorder %s133, %s135
    %p142 = scmp.eq.s32.totalorder %s20, 1
    %p143 = por %p141, %p142
    %p144 = scmp.ne.s32.totalorder %s135, %s136
    %p145 = scmp.eq.s32.totalorder %s20, 0
    %p146 = por %p144, %p145
    %p147 = scmp.ne.s32.totalorder %s135, %s136
    %p148 = scmp.eq.s32.totalorder %s21, 1
    %p149 = por %p147, %p148
    %p151 = scmp.ne.s32.totalorder %s136, %s150
    %p152 = scmp.eq.s32.totalorder %s21, 0
    %p153 = por %p151, %p152
    %s155 = sadd.s32 %s154, 1
    %p158 = scmp.eq.s32.totalorder %s15, 1
    %p159 = scmp.ne.s32.totalorder %s154, %s156
    %p160 = scmp.eq.s32.totalorder %s15, 0
    %p161 = por %p159, %p160
    %p162 = scmp.ne.s32.totalorder %s154, %s156
    %p163 = scmp.eq.s32.totalorder %s20, 1
    %p164 = por %p162, %p163
    %p165 = scmp.ne.s32.totalorder %s156, %s157
    %p166 = scmp.eq.s32.totalorder %s20, 0
    %p167 = por %p165, %p166
    %p168 = scmp.ne.s32.totalorder %s156, %s157
    %p169 = scmp.eq.s32.totalorder %s21, 1
    %p170 = por %p168, %p169
    %p172 = scmp.ne.s32.totalorder %s157, %s171
    %p173 = scmp.eq.s32.totalorder %s21, 0
    %p174 = por %p172, %p173
    %s176 = sadd.s32 %s175, 1
    %p179 = scmp.eq.s32.totalorder %s15, 1
    %p180 = scmp.ne.s32.totalorder %s175, %s177
    %p181 = scmp.eq.s32.totalorder %s15, 0
    %p182 = por %p180, %p181
    %p183 = scmp.ne.s32.totalorder %s175, %s177
    %p184 = scmp.eq.s32.totalorder %s20, 1
    %p185 = por %p183, %p184
    %p186 = scmp.ne.s32.totalorder %s177, %s178
    %p187 = scmp.eq.s32.totalorder %s20, 0
    %p188 = por %p186, %p187
    %p189 = scmp.ne.s32.totalorder %s177, %s178
    %p190 = scmp.eq.s32.totalorder %s21, 1
    %p191 = por %p189, %p190
    %p193 = scmp.ne.s32.totalorder %s178, %s192
    %p194 = scmp.eq.s32.totalorder %s21, 0
    %p195 = por %p193, %p194
    %s197 = sadd.s32 %s196, 1
    %p200 = scmp.eq.s32.totalorder %s15, 1
    %p201 = scmp.ne.s32.totalorder %s196, %s198
    %p202 = scmp.eq.s32.totalorder %s15, 0
    %p203 = por %p201, %p202
    %p204 = scmp.ne.s32.totalorder %s196, %s198
    %p205 = scmp.eq.s32.totalorder %s20, 1
    %p206 = por %p204, %p205
    %p207 = scmp.ne.s32.totalorder %s198, %s199
    %p208 = scmp.eq.s32.totalorder %s20, 0
    %p209 = por %p207, %p208
    %p210 = scmp.ne.s32.totalorder %s198, %s199
    %p211 = scmp.eq.s32.totalorder %s21, 1
    %p212 = por %p210, %p211
    %p214 = scmp.ne.s32.totalorder %s199, %s213
    %p215 = scmp.eq.s32.totalorder %s21, 0
    %p216 = por %p214, %p215
    %s217 = ssub.s32 %s15, %s22
    %p218 = scmp.eq.s32.totalorder %s217, 0
    %s220 = sadd.s32 %s219, 1
    %s221 = scalar_select %p218, %s219, %s220
    %p224 = pneg %p218
    %p225 = scmp.eq.s32.totalorder %s15, 1
    %p226 = por %p224, %p225
    %p227 = scmp.ne.s32.totalorder %s219, %s222
    %p228 = scmp.eq.s32.totalorder %s15, 0
    %p229 = por %p227, %p228
    %p230 = scmp.ne.s32.totalorder %s219, %s222
    %p231 = scmp.eq.s32.totalorder %s20, 1
    %p232 = por %p230, %p231
    %p233 = scmp.ne.s32.totalorder %s222, %s223
    %p234 = scmp.eq.s32.totalorder %s20, 0
    %p235 = por %p233, %p234
    %p236 = scmp.ne.s32.totalorder %s222, %s223
    %p237 = scmp.eq.s32.totalorder %s21, 1
    %p238 = por %p236, %p237
    %p240 = scmp.ne.s32.totalorder %s223, %s239
    %p241 = scmp.eq.s32.totalorder %s21, 0
    %p242 = por %p240, %p241
    %p243 = scmp.le.s32.totalorder 1, %s15
    %p244 = scmp.lt.s32.totalorder %s15, 3
    %p245 = pnand %p243, %p244
    %p246 = pneg %p245
    // Predicated region
    $region9: #{inception2_forward.1} parent=5 // pred_check
      _
    $region10: #{inception2_forward.1} parent=5 // pred_check_branch
      %248 = sbr.rel (%p245) target = $region12
    $region11: #{inception2_forward.1} parent=5 // pred_region
      %s249 = ssub.s32 %s15, 1
      // Predicated region
      $region13: #{inception2_forward.1} parent=11 // pred_check
        %p250 = pneg %p62
      $region14: #{inception2_forward.1} parent=11 // pred_check_branch
        %252 = sbr.rel (%p250) target = $region16
      $region15: #{inception2_forward.1} parent=11 // pred_region
        _
      $region16: #{inception2_forward.1} parent=11 // pred_fallthru
        _
      // Predicated region
      $region17: #{inception2_forward.1} parent=11 // pred_check
        %p253 = pneg %p83
      $region18: #{inception2_forward.1} parent=11 // pred_check_branch
        %255 = sbr.rel (%p253) target = $region20
      $region19: #{inception2_forward.1} parent=11 // pred_region
        _
      $region20: #{inception2_forward.1} parent=11 // pred_fallthru
        _
      // Predicated region
      $region21: #{inception2_forward.1} parent=11 // pred_check
        %p256 = pneg %p104
      $region22: #{inception2_forward.1} parent=11 // pred_check_branch
        %258 = sbr.rel (%p256) target = $region24
      $region23: #{inception2_forward.1} parent=11 // pred_region
        _
      $region24: #{inception2_forward.1} parent=11 // pred_fallthru
        _
      // Predicated region
      $region25: #{inception2_forward.1} parent=11 // pred_check
        %p259 = pneg %p125
      $region26: #{inception2_forward.1} parent=11 // pred_check_branch
        %261 = sbr.rel (%p259) target = $region28
      $region27: #{inception2_forward.1} parent=11 // pred_region
        _
      $region28: #{inception2_forward.1} parent=11 // pred_fallthru
        _
      // Predicated region
      $region29: #{inception2_forward.1} parent=11 // pred_check
        %p262 = pneg %p146
      $region30: #{inception2_forward.1} parent=11 // pred_check_branch
        %264 = sbr.rel (%p262) target = $region32
      $region31: #{inception2_forward.1} parent=11 // pred_region
        _
      $region32: #{inception2_forward.1} parent=11 // pred_fallthru
        _
      // Predicated region
      $region33: #{inception2_forward.1} parent=11 // pred_check
        %p265 = pneg %p167
      $region34: #{inception2_forward.1} parent=11 // pred_check_branch
        %267 = sbr.rel (%p265) target = $region36
      $region35: #{inception2_forward.1} parent=11 // pred_region
        _
      $region36: #{inception2_forward.1} parent=11 // pred_fallthru
        _
      // Predicated region
      $region37: #{inception2_forward.1} parent=11 // pred_check
        %p268 = pneg %p188
      $region38: #{inception2_forward.1} parent=11 // pred_check_branch
        %270 = sbr.rel (%p268) target = $region40
      $region39: #{inception2_forward.1} parent=11 // pred_region
        _
      $region40: #{inception2_forward.1} parent=11 // pred_fallthru
        _
      // Predicated region
      $region41: #{inception2_forward.1} parent=11 // pred_check
        %p271 = pneg %p209
      $region42: #{inception2_forward.1} parent=11 // pred_check_branch
        %273 = sbr.rel (%p271) target = $region44
      $region43: #{inception2_forward.1} parent=11 // pred_region
        _
      $region44: #{inception2_forward.1} parent=11 // pred_fallthru
        _
    $region12: #{inception2_forward.1} parent=5 // pred_fallthru
      _
    %p274 = scmp.lt.s32.totalorder %s15, 2
    // Predicated region
    $region45: #{inception2_forward.1} parent=5 // pred_check
      %p275 = pneg %p274
    $region46: #{inception2_forward.1} parent=5 // pred_check_branch
      %277 = sbr.rel (%p275) target = $region48
    $region47: #{inception2_forward.1} parent=5 // pred_region
      // Predicated region
      $region49: #{inception2_forward.1} parent=47 // pred_check
        %p278 = pneg %p35
      $region50: #{inception2_forward.1} parent=47 // pred_check_branch
        %280 = sbr.rel (%p278) target = $region52
      $region51: #{inception2_forward.1} parent=47 // pred_region
        %p281 = scmp.lt.s32.totalorder %s15, 1
        %s282 = scalar_select %p281, %s15, 1
        %s283 = smul.addr %s282, 2
        %s284 = smul.addr %s283, 4
        %s285 = scalar_lea.vmem %s0, %s284
      $region52: #{inception2_forward.1} parent=47 // pred_fallthru
        _
    $region48: #{inception2_forward.1} parent=5 // pred_fallthru
      _
    %p286 = scmp.le.s32.totalorder 1, %s15
    %p287 = scmp.lt.s32.totalorder %s15, 3
    %p288 = pnand %p286, %p287
    %p289 = pneg %p288
    // Predicated region
    $region53: #{inception2_forward.1} parent=5 // pred_check
      _
    $region54: #{inception2_forward.1} parent=5 // pred_check_branch
      %291 = sbr.rel (%p288) target = $region56
    $region55: #{inception2_forward.1} parent=5 // pred_region
      %s292 = ssub.s32 %s15, 1
      %p293 = scmp.lt.s32.totalorder %s20, 1
      %s294 = scalar_select %p293, %s20, 1
      %s295 = smul.addr %s294, 2
      %s296 = smul.addr %s295, 4
      %s297 = scalar_lea.vmem %s0, %s296
      %p298 = pneg %p41
      %p299 = pneg %p38
      %p300 = pneg %p62
      %p301 = pneg %p59
      %p302 = pneg %p83
      %p303 = pneg %p80
      %p304 = pneg %p104
      %p305 = pneg %p101
      %p306 = pneg %p125
      %p307 = pneg %p122
      %p308 = pneg %p146
      %p309 = pneg %p143
      %p310 = pneg %p167
      %p311 = pneg %p164
      %p312 = pneg %p188
      %p313 = pneg %p185
      %p314 = pneg %p209
      %p315 = pneg %p206
      %p316 = pneg %p235
      %p317 = pneg %p232
      %p318 = scmp.lt.s32.totalorder %s20, 1
      %s319 = scalar_select %p318, %s20, 1
      %s320 = smul.addr %s319, 8
      %s321 = smul.addr %s320, 8
      %s322 = scalar_lea.vmem %s9, %s321
      %p323 = scmp.lt.s32.totalorder %s20, 1
      %s324 = scalar_select %p323, %s20, 1
      %s325 = smul.addr %s324, 2
      %s326 = smul.addr %s325, 4
      %s327 = scalar_lea.vmem %s0, %s326
      %p328 = scmp.lt.s32.totalorder %s20, 1
      %s329 = scalar_select %p328, %s20, 1
      %s330 = smul.addr %s329, 8
      %s331 = smul.addr %s330, 8
      %s332 = scalar_lea.vmem %s9, %s331
      %333 = vst [vmem:[#allocation2] sm:$0xff] 0.0
      %334 = vst [vmem:[#allocation2 + $0x18] sm:$0xff] 0.0
      %v335 = vld [vmem:[%s1] ss:$2 sm:$0x3]
      %s336 = scalar_lea.vmem %s1, 1
      %v337 = vld [vmem:[%s336] ss:$2 sm:$0x3]
      %v338 = vld [vmem:[%s327] sm:$0xff]
      %v339 = vld [vmem:[%s2] sm:$0xff]
      %v340 = vld [vmem:[%s2 + $0x8] sm:$0xff]
      %v341 = vld [vmem:[%s2 + $0x10] sm:$0xff]
      %v343 = vcombine.high %v338, %v338
      %vm344 = vcmask 31744
      %v346 = vsel %vm344, %v339, 0
      %v349 = vsel %vm344, %v340, 0
      %v352 = vsel %vm344, %v341, 0
      %vm354 = vcmask 1043456
      %v355 = vsel %vm354, %v338, 0
      %v357 = vsel %vm354, %v343, 0
      %359 = vmatprep.subr.mxu0 %v357
      %360 = vmatpush1.msra.mxu0 %v355
      %361 = vmatprep.subr.mxu0 0.0
      %362 = vmatpush1.msra.mxu0 0.0
      %363 = vmatprep.subr.mxu0 0.0
      %364 = vmatpush1.msra.mxu0 0.0
      %365 = vmatprep.subr.mxu0 0.0
      %366 = vmatpush1.msra.mxu0 0.0
      %367 = vmatprep.subr.mxu0 0.0
      %368 = vmatpush1.msra.mxu0 0.0
      %369 = vmatprep.subr.mxu0 0.0
      %370 = vmatpush1.msra.mxu0 0.0
      %371 = vmatprep.subr.mxu0 0.0
      %372 = vmatpush1.msra.mxu0 0.0
      %373 = vmatprep.subr.mxu0 0.0
      %374 = vmatpush1.msra.mxu0 0.0
      %375 = vmatprep.subr.mxu0 0.0
      %376 = vmatpush1.msra.mxu0 0.0
      %377 = vmatprep.subr.mxu0 0.0
      %378 = vmatpush1.msra.mxu0 0.0
      %379 = vmatprep.subr.mxu0 0.0
      %380 = vmatpush1.msra.mxu0 0.0
      %381 = vmatprep.subr.mxu0 0.0
      %382 = vmatpush1.msra.mxu0 0.0
      %383 = vmatprep.subr.mxu0 0.0
      %384 = vmatpush1.msra.mxu0 0.0
      %385 = vmatprep.subr.mxu0 0.0
      %386 = vmatpush1.msra.mxu0 0.0
      %387 = vmatprep.subr.mxu0 0.0
      %388 = vmatpush1.msra.mxu0 0.0
      %389 = vmatprep.subr.mxu0 0.0
      %390 = vmatpush1.msra.mxu0 0.0
      %391 = vmatprep.subr.mxu0 0.0
      %392 = vmatpush1.msra.mxu0 0.0
      %393 = vmatprep.subr.mxu0 0.0
      %394 = vmatpush1.msra.mxu0 0.0
      %395 = vmatprep.subr.mxu0 0.0
      %396 = vmatpush1.msra.mxu0 0.0
      %397 = vmatprep.subr.mxu0 0.0
      %398 = vmatpush1.msra.mxu0 0.0
      %399 = vmatprep.subr.mxu0 0.0
      %400 = vmatpush1.msra.mxu0 0.0
      %401 = vmatprep.subr.mxu0 0.0
      %402 = vmatpush1.msra.mxu0 0.0
      %403 = vmatprep.subr.mxu0 0.0
      %404 = vmatpush1.msra.mxu0 0.0
      %405 = vmatprep.subr.mxu0 0.0
      %406 = vmatpush1.msra.mxu0 0.0
      %407 = vmatprep.subr.mxu0 0.0
      %408 = vmatpush1.msra.mxu0 0.0
      %409 = vmatprep.subr.mxu0 0.0
      %410 = vmatpush1.msra.mxu0 0.0
      %411 = vmatprep.subr.mxu0 0.0
      %412 = vmatpush1.msra.mxu0 0.0
      %413 = vmatprep.subr.mxu0 0.0
      %414 = vmatpush1.msra.mxu0 0.0
      %415 = vmatprep.subr.mxu0 0.0
      %416 = vmatpush1.msra.mxu0 0.0
      %417 = vmatprep.subr.mxu0 0.0
      %418 = vmatpush1.msra.mxu0 0.0
      %419 = vmatprep.subr.mxu0 0.0
      %420 = vmatpush1.msra.mxu0 0.0
      %421 = vmatprep.subr.mxu0 0.0
      %422 = vmatpush1.msra.mxu0 0.0
      %423 = vmatprep.mubr.f32.mxu0 0.0
      %424 = vmatmul.mubr.f32.gmra.mrb[0].mxu0 %v346
      %v425 = vpop.f32.mrb[0].mxu0
      %v426 = vadd.f32 0.0, %v425
      %v427 = vpop.f32.mrb[0].mxu0
      %v428 = vadd.f32 0.0, %v427
      %429 = vmatprep.mubr.f32.mxu0 0.0
      %430 = vmatmul.mubr.f32.gmra.mrb[0].mxu0 %v349
      %v431 = vpop.f32.mrb[0].mxu0
      %v432 = vadd.f32 0.0, %v431
      %v433 = vpop.f32.mrb[0].mxu0
      %v434 = vadd.f32 0.0, %v433
      %435 = vmatprep.mubr.f32.mxu0 0.0
      %436 = vmatmul.mubr.f32.gmra.mrb[0].mxu0 %v352
      %v437 = vpop.f32.mrb[0].mxu0
      %v438 = vadd.f32 0.0, %v437
      %v439 = vpop.f32.mrb[0].mxu0
      %v440 = vadd.f32 0.0, %v439
      %441 = vdwg.mxu0
      %v442 = vld [vmem:[%s3] sm:$0xff]
      %v443 = vld [vmem:[%s3 + $0x8] sm:$0xff]
      %445 = vset.pattern.permute.xlu0 0
      %446 = vperm.xlu0 %445, %v442
      %v447 = vpop.permute.xlu0 %446
      %450 = vset.pattern.permute.xlu0 0
      %451 = vperm.xlu0 %450, %v443
      %v452 = vpop.permute.xlu0 %451
      %v454 = vadd.f32 %v426, %v447
      %v455 = vadd.f32 %v428, %v447
      %v456 = vadd.f32 %v432, %v452
      %v457 = vadd.f32 %v434, %v452
      %v458 = vmax.f32 %v454, 0.0
      %v459 = vmax.f32 %v455, 0.0
      %v460 = vmax.f32 %v456, 0.0
      %v461 = vmax.f32 %v457, 0.0
      %462 = vst [vmem:[%s332] sm:$0xff] %v458
      %463 = vst [vmem:[%s332 + $0x8] sm:$0xff] %v459
      %464 = vst [vmem:[#allocation2 + $0x8] sm:$0xff] %v460
      %465 = vst [vmem:[#allocation2 + $0x10] sm:$0xff] %v461
      %v466 = vld [vmem:[#allocation2] sm:$0xff]
      %v467 = vld [vmem:[#allocation2 + $0x8] sm:$0xff]
      %v468 = vld [vmem:[#allocation2 + $0x10] sm:$0xff]
      %v470 = vlaneseq
      %v471 = vshrl.u32 %v470, 7
      %v472 = vsub.s32 0, %v471
      %v473 = vrot.slane %v335, %v472
      %v474 = vlaneseq
      %v475 = vshrl.u32 %v474, 7
      %v476 = vsub.s32 1, %v475
      %v477 = vrot.slane %v335, %v476
      %478 = vrot.lane.b32.xlu0 %v473, 111
      %v479 = vpop.permute.xlu0 %478
      %480 = vrot.lane.b32.xlu0 %v477, 111
      %v481 = vpop.permute.xlu0 %480
      %vm482 = vcmask 908288
      %v483 = vsel %vm482, %v479, %v481
      %v487 = vmul.f32 %v466, %v479
      %v488 = vmul.f32 %v467, %v483
      %v489 = vmul.f32 %v468, %v481
      %493 = vrot.lane.b32.xlu0 %v487, 17
      %v494 = vpop.permute.xlu0 %493
      %495 = vrot.lane.b32.xlu0 %v488, 17
      %v496 = vpop.permute.xlu0 %495
      %497 = vrot.lane.b32.xlu0 %v489, 17
      %v498 = vpop.permute.xlu0 %497
      %vm499 = vcmask 138240
      %v500 = vsel %vm499, %v494, %v496
      %v501 = vsel %vm499, %v496, %v498
      %504 = vst [vmem:[#allocation3] sm:$0xff] %v500
      %505 = vst [vmem:[#allocation3 + $0x8] sm:$0xff] %v501
      %v506 = vld [vmem:[#allocation2] sm:$0xff]
      %v507 = vld [vmem:[#allocation2 + $0x8] sm:$0xff]
      %v508 = vld [vmem:[#allocation2 + $0x10] sm:$0xff]
      %512 = vrot.lane.b32.xlu0 %v506, 16
      %v513 = vpop.permute.xlu0 %512
      %514 = vrot.lane.b32.xlu0 %v507, 16
      %v515 = vpop.permute.xlu0 %514
      %516 = vrot.lane.b32.xlu0 %v508, 16
      %v517 = vpop.permute.xlu0 %516
      %vm518 = vcmask 130048
      %v519 = vsel %vm518, %v513, %v515
      %v520 = vsel %vm518, %v515, %v517
      %523 = vst [vmem:[#allocation3 + $0x10] sm:$0xff] %v519
      %524 = vst [vmem:[#allocation3 + $0x18] sm:$0xff] %v520
      %v525 = vld [vmem:[#allocation2] sm:$0xff]
      %v526 = vld [vmem:[#allocation2 + $0x8] sm:$0xff]
      %v527 = vld [vmem:[#allocation2 + $0x10] sm:$0xff]
      %v529 = vlaneseq
      %v530 = vshrl.u32 %v529, 7
      %v531 = vsub.s32 0, %v530
      %v532 = vrot.slane %v337, %v531
      %v533 = vlaneseq
      %v534 = vshrl.u32 %v533, 7
      %v535 = vsub.s32 1, %v534
      %v536 = vrot.slane %v337, %v535
      %537 = vrot.lane.b32.xlu0 %v532, 113
      %v538 = vpop.permute.xlu0 %537
      %539 = vrot.lane.b32.xlu0 %v536, 113
      %v540 = vpop.permute.xlu0 %539
      %vm541 = vcmask 924672
      %v542 = vsel %vm541, %v538, %v540
      %v546 = vmul.f32 %v525, %v538
      %v547 = vmul.f32 %v526, %v542
      %v548 = vmul.f32 %v527, %v540
      %552 = vrot.lane.b32.xlu0 %v546, 15
      %v553 = vpop.permute.xlu0 %552
      %554 = vrot.lane.b32.xlu0 %v547, 15
      %v555 = vpop.permute.xlu0 %554
      %556 = vrot.lane.b32.xlu0 %v548, 15
      %v557 = vpop.permute.xlu0 %556
      %vm558 = vcmask 121856
      %v559 = vsel %vm558, %v553, %v555
      %v560 = vsel %vm558, %v555, %v557
      %563 = vst [vmem:[#allocation3 + $0x20] sm:$0xff] %v559
      %564 = vst [vmem:[#allocation3 + $0x28] sm:$0xff] %v560
      %v565 = vld [vmem:[#allocation2] sm:$0xff]
      %v566 = vld [vmem:[#allocation2 + $0x8] sm:$0xff]
      %v567 = vld [vmem:[#allocation2 + $0x10] sm:$0xff]
      %568 = vrot.lane.b32.xlu0 %v473, 127
      %v569 = vpop.permute.xlu0 %568
      %570 = vrot.lane.b32.xlu0 %v477, 127
      %v571 = vpop.permute.xlu0 %570
      %vm572 = vcmask 1039360
      %v573 = vsel %vm572, %v569, %v571
      %v577 = vmul.f32 %v565, %v569
      %v578 = vmul.f32 %v566, %v573
      %v579 = vmul.f32 %v567, %v571
      %583 = vrot.lane.b32.xlu0 %v577, 1
      %v584 = vpop.permute.xlu0 %583
      %585 = vrot.lane.b32.xlu0 %v578, 1
      %v586 = vpop.permute.xlu0 %585
      %587 = vrot.lane.b32.xlu0 %v579, 1
      %v588 = vpop.permute.xlu0 %587
      %vm589 = vcmask 7168
      %v590 = vsel %vm589, %v584, %v586
      %v591 = vsel %vm589, %v586, %v588
      %594 = vst [vmem:[#allocation3 + $0x30] sm:$0xff] %v590
      %595 = vst [vmem:[#allocation3 + $0x38] sm:$0xff] %v591
      %596 = vst [vmem:[#allocation3 + $0x40] sm:$0xff] %v460
      %597 = vst [vmem:[#allocation3 + $0x48] sm:$0xff] %v461
      %v598 = vld [vmem:[#allocation2 + $0x8] sm:$0xff]
      %v599 = vld [vmem:[#allocation2 + $0x10] sm:$0xff]
      %v600 = vld [vmem:[#allocation2 + $0x18] sm:$0xff]
      %601 = vrot.lane.b32.xlu0 %v532, 1
      %v602 = vpop.permute.xlu0 %601
      %603 = vrot.lane.b32.xlu0 %v536, 1
      %v604 = vpop.permute.xlu0 %603
      %v605 = vsel %vm589, %v602, %v604
      %v609 = vmul.f32 %v598, %v602
      %v610 = vmul.f32 %v599, %v605
      %v611 = vmul.f32 %v600, %v604
      %615 = vrot.lane.b32.xlu0 %v609, 127
      %v616 = vpop.permute.xlu0 %615
      %617 = vrot.lane.b32.xlu0 %v610, 127
      %v618 = vpop.permute.xlu0 %617
      %619 = vrot.lane.b32.xlu0 %v611, 127
      %v620 = vpop.permute.xlu0 %619
      %v621 = vsel %vm572, %v616, %v618
      %v622 = vsel %vm572, %v618, %v620
      %625 = vst [vmem:[#allocation3 + $0x50] sm:$0xff] %v621
      %626 = vst [vmem:[#allocation3 + $0x58] sm:$0xff] %v622
      %v627 = vld [vmem:[#allocation2 + $0x8] sm:$0xff]
      %v628 = vld [vmem:[#allocation2 + $0x10] sm:$0xff]
      %v629 = vld [vmem:[#allocation2 + $0x18] sm:$0xff]
      %630 = vrot.lane.b32.xlu0 %v473, 15
      %v631 = vpop.permute.xlu0 %630
      %632 = vrot.lane.b32.xlu0 %v477, 15
      %v633 = vpop.permute.xlu0 %632
      %v634 = vsel %vm558, %v631, %v633
      %v638 = vmul.f32 %v627, %v631
      %v639 = vmul.f32 %v628, %v634
      %v640 = vmul.f32 %v629, %v633
      %644 = vrot.lane.b32.xlu0 %v638, 113
      %v645 = vpop.permute.xlu0 %644
      %646 = vrot.lane.b32.xlu0 %v639, 113
      %v647 = vpop.permute.xlu0 %646
      %648 = vrot.lane.b32.xlu0 %v640, 113
      %v649 = vpop.permute.xlu0 %648
      %v650 = vsel %vm541, %v645, %v647
      %v651 = vsel %vm541, %v647, %v649
      %654 = vst [vmem:[#allocation3 + $0x60] sm:$0xff] %v650
      %655 = vst [vmem:[#allocation3 + $0x68] sm:$0xff] %v651
      %v656 = vld [vmem:[#allocation2 + $0x8] sm:$0xff]
      %v657 = vld [vmem:[#allocation2 + $0x10] sm:$0xff]
      %v658 = vld [vmem:[#allocation2 + $0x18] sm:$0xff]
      %662 = vrot.lane.b32.xlu0 %v656, 112
      %v663 = vpop.permute.xlu0 %662
      %664 = vrot.lane.b32.xlu0 %v657, 112
      %v665 = vpop.permute.xlu0 %664
      %666 = vrot.lane.b32.xlu0 %v658, 112
      %v667 = vpop.permute.xlu0 %666
      %vm668 = vcmask 916480
      %v669 = vsel %vm668, %v663, %v665
      %v670 = vsel %vm668, %v665, %v667
      %673 = vst [vmem:[#allocation3 + $0x70] sm:$0xff] %v669
      %674 = vst [vmem:[#allocation3 + $0x78] sm:$0xff] %v670
      %v675 = vld [vmem:[#allocation2 + $0x8] sm:$0xff]
      %v676 = vld [vmem:[#allocation2 + $0x10] sm:$0xff]
      %v677 = vld [vmem:[#allocation2 + $0x18] sm:$0xff]
      %678 = vrot.lane.b32.xlu0 %v532, 17
      %v679 = vpop.permute.xlu0 %678
      %680 = vrot.lane.b32.xlu0 %v536, 17
      %v681 = vpop.permute.xlu0 %680
      %v682 = vsel %vm499, %v679, %v681
      %v686 = vmul.f32 %v675, %v679
      %v687 = vmul.f32 %v676, %v682
      %v688 = vmul.f32 %v677, %v681
      %692 = vrot.lane.b32.xlu0 %v686, 111
      %v693 = vpop.permute.xlu0 %692
      %694 = vrot.lane.b32.xlu0 %v687, 111
      %v695 = vpop.permute.xlu0 %694
      %696 = vrot.lane.b32.xlu0 %v688, 111
      %v697 = vpop.permute.xlu0 %696
      %v698 = vsel %vm482, %v693, %v695
      %v699 = vsel %vm482, %v695, %v697
      %702 = vst [vmem:[#allocation3 + $0x80] sm:$0xff] %v698
      %703 = vst [vmem:[#allocation3 + $0x88] sm:$0xff] %v699
      %v704 = vld [vmem:[%s4] sm:$0xff]
      %v705 = vld [vmem:[%s4 + $0x8] sm:$0xff]
      %v706 = vld [vmem:[#allocation3] sm:$0xff]
      %v707 = vld [vmem:[#allocation3 + $0x8] sm:$0xff]
      %v708 = vld [vmem:[#allocation3 + $0x10] sm:$0xff]
      %v709 = vld [vmem:[#allocation3 + $0x18] sm:$0xff]
      %v710 = vld [vmem:[#allocation3 + $0x20] sm:$0xff]
      %v711 = vld [vmem:[#allocation3 + $0x28] sm:$0xff]
      %v712 = vld [vmem:[#allocation3 + $0x30] sm:$0xff]
      %v713 = vld [vmem:[#allocation3 + $0x38] sm:$0xff]
      %v714 = vld [vmem:[#allocation3 + $0x40] sm:$0xff]
      %v715 = vld [vmem:[#allocation3 + $0x48] sm:$0xff]
      %v716 = vld [vmem:[#allocation3 + $0x50] sm:$0xff]
      %v717 = vld [vmem:[#allocation3 + $0x58] sm:$0xff]
      %v718 = vld [vmem:[#allocation3 + $0x60] sm:$0xff]
      %v719 = vld [vmem:[#allocation3 + $0x68] sm:$0xff]
      %v720 = vld [vmem:[#allocation3 + $0x70] sm:$0xff]
      %v721 = vld [vmem:[#allocation3 + $0x78] sm:$0xff]
      %v722 = vld [vmem:[#allocation3 + $0x80] sm:$0xff]
      %v723 = vld [vmem:[#allocation3 + $0x88] sm:$0xff]
      %v724 = vld [vmem:[%s5] sm:$0xff]
      %v725 = vld [vmem:[%s5 + $0x8] sm:$0xff]
      %727 = vset.pattern.permute.xlu0 0
      %728 = vperm.xlu0 %727, %v724
      %v729 = vpop.permute.xlu0 %728
      %732 = vset.pattern.permute.xlu0 0
      %733 = vperm.xlu0 %732, %v725
      %v734 = vpop.permute.xlu0 %733
      %vm736 = vcmask 588800
      %v738 = vsel %vm736, %v704, 0
      %v741 = vsel %vm736, %v705, 0
      %743 = vmatprep.subr.mxu0 %v707
      %744 = vmatpush1.msra.mxu0 %v706
      %745 = vmatprep.subr.mxu0 %v709
      %746 = vmatpush1.msra.mxu0 %v708
      %747 = vmatprep.subr.mxu0 %v711
      %748 = vmatpush1.msra.mxu0 %v710
      %749 = vmatprep.subr.mxu0 %v713
      %750 = vmatpush1.msra.mxu0 %v712
      %751 = vmatprep.subr.mxu0 %v715
      %752 = vmatpush1.msra.mxu0 %v714
      %753 = vmatprep.subr.mxu0 %v717
      %754 = vmatpush1.msra.mxu0 %v716
      %755 = vmatprep.subr.mxu0 %v719
      %756 = vmatpush1.msra.mxu0 %v718
      %757 = vmatprep.subr.mxu0 %v721
      %758 = vmatpush1.msra.mxu0 %v720
      %759 = vmatprep.subr.mxu0 %v723
      %760 = vmatpush1.msra.mxu0 %v722
      %761 = vmatprep.subr.mxu0 0.0
      %762 = vmatpush1.msra.mxu0 0.0
      %763 = vmatprep.subr.mxu0 0.0
      %764 = vmatpush1.msra.mxu0 0.0
      %765 = vmatprep.subr.mxu0 0.0
      %766 = vmatpush1.msra.mxu0 0.0
      %767 = vmatprep.subr.mxu0 0.0
      %768 = vmatpush1.msra.mxu0 0.0
      %769 = vmatprep.subr.mxu0 0.0
      %770 = vmatpush1.msra.mxu0 0.0
      %771 = vmatprep.subr.mxu0 0.0
      %772 = vmatpush1.msra.mxu0 0.0
      %773 = vmatprep.subr.mxu0 0.0
      %774 = vmatpush1.msra.mxu0 0.0
      %775 = vmatprep.subr.mxu0 0.0
      %776 = vmatpush1.msra.mxu0 0.0
      %777 = vmatprep.subr.mxu0 0.0
      %778 = vmatpush1.msra.mxu0 0.0
      %779 = vmatprep.subr.mxu0 0.0
      %780 = vmatpush1.msra.mxu0 0.0
      %781 = vmatprep.subr.mxu0 0.0
      %782 = vmatpush1.msra.mxu0 0.0
      %783 = vmatprep.subr.mxu0 0.0
      %784 = vmatpush1.msra.mxu0 0.0
      %785 = vmatprep.subr.mxu0 0.0
      %786 = vmatpush1.msra.mxu0 0.0
      %787 = vmatprep.subr.mxu0 0.0
      %788 = vmatpush1.msra.mxu0 0.0
      %789 = vmatprep.subr.mxu0 0.0
      %790 = vmatpush1.msra.mxu0 0.0
      %791 = vmatprep.subr.mxu0 0.0
      %792 = vmatpush1.msra.mxu0 0.0
      %793 = vmatprep.subr.mxu0 0.0
      %794 = vmatpush1.msra.mxu0 0.0
      %795 = vmatprep.subr.mxu0 0.0
      %796 = vmatpush1.msra.mxu0 0.0
      %797 = vmatprep.subr.mxu0 0.0
      %798 = vmatpush1.msra.mxu0 0.0
      %799 = vmatprep.subr.mxu0 0.0
      %800 = vmatpush1.msra.mxu0 0.0
      %801 = vmatprep.subr.mxu0 0.0
      %802 = vmatpush1.msra.mxu0 0.0
      %803 = vmatprep.subr.mxu0 0.0
      %804 = vmatpush1.msra.mxu0 0.0
      %805 = vmatprep.subr.mxu0 0.0
      %806 = vmatpush1.msra.mxu0 0.0
      %807 = vmatprep.mubr.f32.mxu0 0.0
      %808 = vmatmul.mubr.f32.gmra.mrb[0].mxu0 %v738
      %v809 = vpop.f32.mrb[0].mxu0
      %v810 = vadd.f32 %v729, %v809
      %v811 = vpop.f32.mrb[0].mxu0
      %v812 = vadd.f32 %v729, %v811
      %813 = vmatprep.mubr.f32.mxu0 0.0
      %814 = vmatmul.mubr.f32.gmra.mrb[0].mxu0 %v741
      %v815 = vpop.f32.mrb[0].mxu0
      %v816 = vadd.f32 %v734, %v815
      %v817 = vpop.f32.mrb[0].mxu0
      %v818 = vadd.f32 %v734, %v817
      %819 = vdwg.mxu0
      %v820 = vmax.f32 %v810, 0.0
      %v821 = vmax.f32 %v812, 0.0
      %v822 = vmax.f32 %v816, 0.0
      %v823 = vmax.f32 %v818, 0.0
      %824 = vst [vmem:[%s332 + $0x10] sm:$0xff] %v820
      %825 = vst [vmem:[%s332 + $0x18] sm:$0xff] %v821
      %826 = vst [vmem:[#allocation2 + $0x8] sm:$0xff] %v822
      %827 = vst [vmem:[#allocation2 + $0x10] sm:$0xff] %v823
      %v828 = vld [vmem:[#allocation2] sm:$0xff]
      %v829 = vld [vmem:[#allocation2 + $0x8] sm:$0xff]
      %v830 = vld [vmem:[#allocation2 + $0x10] sm:$0xff]
      %v831 = vmul.f32 %v828, %v479
      %v832 = vmul.f32 %v829, %v483
      %v833 = vmul.f32 %v830, %v481
      %837 = vrot.lane.b32.xlu0 %v831, 17
      %v838 = vpop.permute.xlu0 %837
      %839 = vrot.lane.b32.xlu0 %v832, 17
      %v840 = vpop.permute.xlu0 %839
      %841 = vrot.lane.b32.xlu0 %v833, 17
      %v842 = vpop.permute.xlu0 %841
      %v843 = vsel %vm499, %v838, %v840
      %v844 = vsel %vm499, %v840, %v842
      %847 = vst [vmem:[#allocation3] sm:$0xff] %v843
      %848 = vst [vmem:[#allocation3 + $0x8] sm:$0xff] %v844
      %v849 = vld [vmem:[#allocation2] sm:$0xff]
      %v850 = vld [vmem:[#allocation2 + $0x8] sm:$0xff]
      %v851 = vld [vmem:[#allocation2 + $0x10] sm:$0xff]
      %855 = vrot.lane.b32.xlu0 %v849, 16
      %v856 = vpop.permute.xlu0 %855
      %857 = vrot.lane.b32.xlu0 %v850, 16
      %v858 = vpop.permute.xlu0 %857
      %859 = vrot.lane.b32.xlu0 %v851, 16
      %v860 = vpop.permute.xlu0 %859
      %v861 = vsel %vm518, %v856, %v858
      %v862 = vsel %vm518, %v858, %v860
      %865 = vst [vmem:[#allocation3 + $0x10] sm:$0xff] %v861
      %866 = vst [vmem:[#allocation3 + $0x18] sm:$0xff] %v862
      %v867 = vld [vmem:[#allocation2] sm:$0xff]
      %v868 = vld [vmem:[#allocation2 + $0x8] sm:$0xff]
      %v869 = vld [vmem:[#allocation2 + $0x10] sm:$0xff]
      %v870 = vmul.f32 %v867, %v538
      %v871 = vmul.f32 %v868, %v542
      %v872 = vmul.f32 %v869, %v540
      %876 = vrot.lane.b32.xlu0 %v870, 15
      %v877 = vpop.permute.xlu0 %876
      %878 = vrot.lane.b32.xlu0 %v871, 15
      %v879 = vpop.permute.xlu0 %878
      %880 = vrot.lane.b32.xlu0 %v872, 15
      %v881 = vpop.permute.xlu0 %880
      %v882 = vsel %vm558, %v877, %v879
      %v883 = vsel %vm558, %v879, %v881
      %886 = vst [vmem:[#allocation3 + $0x20] sm:$0xff] %v882
      %887 = vst [vmem:[#allocation3 + $0x28] sm:$0xff] %v883
      %v888 = vld [vmem:[#allocation2] sm:$0xff]
      %v889 = vld [vmem:[#allocation2 + $0x8] sm:$0xff]
      %v890 = vld [vmem:[#allocation2 + $0x10] sm:$0xff]
      %v891 = vmul.f32 %v888, %v569
      %v892 = vmul.f32 %v889, %v573
      %v893 = vmul.f32 %v890, %v571
      %897 = vrot.lane.b32.xlu0 %v891, 1
      %v898 = vpop.permute.xlu0 %897
      %899 = vrot.lane.b32.xlu0 %v892, 1
      %v900 = vpop.permute.xlu0 %899
      %901 = vrot.lane.b32.xlu0 %v893, 1
      %v902 = vpop.permute.xlu0 %901
      %v903 = vsel %vm589, %v898, %v900
      %v904 = vsel %vm589, %v900, %v902
      %907 = vst [vmem:[#allocation3 + $0x30] sm:$0xff] %v903
      %908 = vst [vmem:[#allocation3 + $0x38] sm:$0xff] %v904
      %909 = vst [vmem:[#allocation3 + $0x40] sm:$0xff] %v822
      %910 = vst [vmem:[#allocation3 + $0x48] sm:$0xff] %v823
      %v911 = vld [vmem:[#allocation2 + $0x8] sm:$0xff]
      %v912 = vld [vmem:[#allocation2 + $0x10] sm:$0xff]
      %v913 = vld [vmem:[#allocation2 + $0x18] sm:$0xff]
      %v914 = vmul.f32 %v911, %v602
      %v915 = vmul.f32 %v912, %v605
      %v916 = vmul.f32 %v913, %v604
      %920 = vrot.lane.b32.xlu0 %v914, 127
      %v921 = vpop.permute.xlu0 %920
      %922 = vrot.lane.b32.xlu0 %v915, 127
      %v923 = vpop.permute.xlu0 %922
      %924 = vrot.lane.b32.xlu0 %v916, 127
      %v925 = vpop.permute.xlu0 %924
      %v926 = vsel %vm572, %v921, %v923
      %v927 = vsel %vm572, %v923, %v925
      %930 = vst [vmem:[#allocation3 + $0x50] sm:$0xff] %v926
      %931 = vst [vmem:[#allocation3 + $0x58] sm:$0xff] %v927
      %v932 = vld [vmem:[#allocation2 + $0x8] sm:$0xff]
      %v933 = vld [vmem:[#allocation2 + $0x10] sm:$0xff]
      %v934 = vld [vmem:[#allocation2 + $0x18] sm:$0xff]
      %v935 = vmul.f32 %v932, %v631
      %v936 = vmul.f32 %v933, %v634
      %v937 = vmul.f32 %v934, %v633
      %941 = vrot.lane.b32.xlu0 %v935, 113
      %v942 = vpop.permute.xlu0 %941
      %943 = vrot.lane.b32.xlu0 %v936, 113
      %v944 = vpop.permute.xlu0 %943
      %945 = vrot.lane.b32.xlu0 %v937, 113
      %v946 = vpop.permute.xlu0 %945
      %v947 = vsel %vm541, %v942, %v944
      %v948 = vsel %vm541, %v944, %v946
      %951 = vst [vmem:[#allocation3 + $0x60] sm:$0xff] %v947
      %952 = vst [vmem:[#allocation3 + $0x68] sm:$0xff] %v948
      %v953 = vld [vmem:[#allocation2 + $0x8] sm:$0xff]
      %v954 = vld [vmem:[#allocation2 + $0x10] sm:$0xff]
      %v955 = vld [vmem:[#allocation2 + $0x18] sm:$0xff]
      %959 = vrot.lane.b32.xlu0 %v953, 112
      %v960 = vpop.permute.xlu0 %959
      %961 = vrot.lane.b32.xlu0 %v954, 112
      %v962 = vpop.permute.xlu0 %961
      %963 = vrot.lane.b32.xlu0 %v955, 112
      %v964 = vpop.permute.xlu0 %963
      %v965 = vsel %vm668, %v960, %v962
      %v966 = vsel %vm668, %v962, %v964
      %969 = vst [vmem:[#allocation3 + $0x70] sm:$0xff] %v965
      %970 = vst [vmem:[#allocation3 + $0x78] sm:$0xff] %v966
      %v971 = vld [vmem:[#allocation2 + $0x8] sm:$0xff]
      %v972 = vld [vmem:[#allocation2 + $0x10] sm:$0xff]
      %v973 = vld [vmem:[#allocation2 + $0x18] sm:$0xff]
      %v974 = vmul.f32 %v971, %v679
      %v975 = vmul.f32 %v972, %v682
      %v976 = vmul.f32 %v973, %v681
      %980 = vrot.lane.b32.xlu0 %v974, 111
      %v981 = vpop.permute.xlu0 %980
      %982 = vrot.lane.b32.xlu0 %v975, 111
      %v983 = vpop.permute.xlu0 %982
      %984 = vrot.lane.b32.xlu0 %v976, 111
      %v985 = vpop.permute.xlu0 %984
      %v986 = vsel %vm482, %v981, %v983
      %v987 = vsel %vm482, %v983, %v985
      %990 = vst [vmem:[#allocation3 + $0x80] sm:$0xff] %v986
      %991 = vst [vmem:[#allocation3 + $0x88] sm:$0xff] %v987
      %v992 = vld [vmem:[%s6] sm:$0xff]
      %v993 = vld [vmem:[#allocation3] sm:$0xff]
      %v994 = vld [vmem:[#allocation3 + $0x8] sm:$0xff]
      %v995 = vld [vmem:[#allocation3 + $0x10] sm:$0xff]
      %v996 = vld [vmem:[#allocation3 + $0x18] sm:$0xff]
      %v997 = vld [vmem:[#allocation3 + $0x20] sm:$0xff]
      %v998 = vld [vmem:[#allocation3 + $0x28] sm:$0xff]
      %v999 = vld [vmem:[#allocation3 + $0x30] sm:$0xff]
      %v1000 = vld [vmem:[#allocation3 + $0x38] sm:$0xff]
      %v1001 = vld [vmem:[#allocation3 + $0x40] sm:$0xff]
      %v1002 = vld [vmem:[#allocation3 + $0x48] sm:$0xff]
      %v1003 = vld [vmem:[#allocation3 + $0x50] sm:$0xff]
      %v1004 = vld [vmem:[#allocation3 + $0x58] sm:$0xff]
      %v1005 = vld [vmem:[#allocation3 + $0x60] sm:$0xff]
      %v1006 = vld [vmem:[#allocation3 + $0x68] sm:$0xff]
      %v1007 = vld [vmem:[#allocation3 + $0x70] sm:$0xff]
      %v1008 = vld [vmem:[#allocation3 + $0x78] sm:$0xff]
      %v1009 = vld [vmem:[#allocation3 + $0x80] sm:$0xff]
      %v1010 = vld [vmem:[#allocation3 + $0x88] sm:$0xff]
      %v1011 = vld [vmem:[%s7] sm:$0xff]
      %1013 = vset.pattern.permute.xlu0 0
      %1014 = vperm.xlu0 %1013, %v1011
      %v1015 = vpop.permute.xlu0 %1014
      %v1018 = vsel %vm736, %v992, 0
      %1020 = vmatprep.subr.mxu0 %v994
      %1021 = vmatpush1.msra.mxu0 %v993
      %1022 = vmatprep.subr.mxu0 %v996
      %1023 = vmatpush1.msra.mxu0 %v995
      %1024 = vmatprep.subr.mxu0 %v998
      %1025 = vmatpush1.msra.mxu0 %v997
      %1026 = vmatprep.subr.mxu0 %v1000
      %1027 = vmatpush1.msra.mxu0 %v999
      %1028 = vmatprep.subr.mxu0 %v1002
      %1029 = vmatpush1.msra.mxu0 %v1001
      %1030 = vmatprep.subr.mxu0 %v1004
      %1031 = vmatpush1.msra.mxu0 %v1003
      %1032 = vmatprep.subr.mxu0 %v1006
      %1033 = vmatpush1.msra.mxu0 %v1005
      %1034 = vmatprep.subr.mxu0 %v1008
      %1035 = vmatpush1.msra.mxu0 %v1007
      %1036 = vmatprep.subr.mxu0 %v1010
      %1037 = vmatpush1.msra.mxu0 %v1009
      %1038 = vmatprep.subr.mxu0 0.0
      %1039 = vmatpush1.msra.mxu0 0.0
      %1040 = vmatprep.subr.mxu0 0.0
      %1041 = vmatpush1.msra.mxu0 0.0
      %1042 = vmatprep.subr.mxu0 0.0
      %1043 = vmatpush1.msra.mxu0 0.0
      %1044 = vmatprep.subr.mxu0 0.0
      %1045 = vmatpush1.msra.mxu0 0.0
      %1046 = vmatprep.subr.mxu0 0.0
      %1047 = vmatpush1.msra.mxu0 0.0
      %1048 = vmatprep.subr.mxu0 0.0
      %1049 = vmatpush1.msra.mxu0 0.0
      %1050 = vmatprep.subr.mxu0 0.0
      %1051 = vmatpush1.msra.mxu0 0.0
      %1052 = vmatprep.subr.mxu0 0.0
      %1053 = vmatpush1.msra.mxu0 0.0
      %1054 = vmatprep.subr.mxu0 0.0
      %1055 = vmatpush1.msra.mxu0 0.0
      %1056 = vmatprep.subr.mxu0 0.0
      %1057 = vmatpush1.msra.mxu0 0.0
      %1058 = vmatprep.subr.mxu0 0.0
      %1059 = vmatpush1.msra.mxu0 0.0
      %1060 = vmatprep.subr.mxu0 0.0
      %1061 = vmatpush1.msra.mxu0 0.0
      %1062 = vmatprep.subr.mxu0 0.0
      %1063 = vmatpush1.msra.mxu0 0.0
      %1064 = vmatprep.subr.mxu0 0.0
      %1065 = vmatpush1.msra.mxu0 0.0
      %1066 = vmatprep.subr.mxu0 0.0
      %1067 = vmatpush1.msra.mxu0 0.0
      %1068 = vmatprep.subr.mxu0 0.0
      %1069 = vmatpush1.msra.mxu0 0.0
      %1070 = vmatprep.subr.mxu0 0.0
      %1071 = vmatpush1.msra.mxu0 0.0
      %1072 = vmatprep.subr.mxu0 0.0
      %1073 = vmatpush1.msra.mxu0 0.0
      %1074 = vmatprep.subr.mxu0 0.0
      %1075 = vmatpush1.msra.mxu0 0.0
      %1076 = vmatprep.subr.mxu0 0.0
      %1077 = vmatpush1.msra.mxu0 0.0
      %1078 = vmatprep.subr.mxu0 0.0
      %1079 = vmatpush1.msra.mxu0 0.0
      %1080 = vmatprep.subr.mxu0 0.0
      %1081 = vmatpush1.msra.mxu0 0.0
      %1082 = vmatprep.subr.mxu0 0.0
      %1083 = vmatpush1.msra.mxu0 0.0
      %1084 = vmatprep.mubr.f32.mxu0 0.0
      %1085 = vmatmul.mubr.f32.gmra.mrb[0].mxu0 %v1018
      %v1086 = vpop.f32.mrb[0].mxu0
      %v1087 = vadd.f32 %v1015, %v1086
      %v1088 = vpop.f32.mrb[0].mxu0
      %v1089 = vadd.f32 %v1015, %v1088
      %1090 = vdwg.mxu0
      %v1091 = vmax.f32 %v1087, 0.0
      %v1092 = vmax.f32 %v1089, 0.0
      %1093 = vst [vmem:[%s332 + $0x20] sm:$0xff] %v1091
      %1094 = vst [vmem:[%s332 + $0x28] sm:$0xff] %v1092
      %1095 = vst [vmem:[#allocation2 + $0x8] sm:$0xff] %v438
      %1096 = vst [vmem:[#allocation2 + $0x10] sm:$0xff] %v440
      %v1097 = vld [vmem:[#allocation2] sm:$0xff]
      %v1098 = vld [vmem:[#allocation2 + $0x8] sm:$0xff]
      %v1099 = vld [vmem:[#allocation2 + $0x10] sm:$0xff]
      %v1100 = vmul.f32 %v1097, %v569
      %v1101 = vmul.f32 %v1098, %v573
      %v1102 = vmul.f32 %v1099, %v571
      %1106 = vrot.lane.b32.xlu0 %v1100, 1
      %v1107 = vpop.permute.xlu0 %1106
      %1108 = vrot.lane.b32.xlu0 %v1101, 1
      %v1109 = vpop.permute.xlu0 %1108
      %1110 = vrot.lane.b32.xlu0 %v1102, 1
      %v1111 = vpop.permute.xlu0 %1110
      %v1112 = vsel %vm589, %v1107, %v1109
      %v1113 = vsel %vm589, %v1109, %v1111
      %v1116 = vadd.f32 %v438, %v1112
      %v1117 = vadd.f32 %v440, %v1113
      %v1118 = vld [vmem:[#allocation2 + $0x8] sm:$0xff]
      %v1119 = vld [vmem:[#allocation2 + $0x10] sm:$0xff]
      %v1120 = vld [vmem:[#allocation2 + $0x18] sm:$0xff]
      %v1121 = vmul.f32 %v1118, %v602
      %v1122 = vmul.f32 %v1119, %v605
      %v1123 = vmul.f32 %v1120, %v604
      %1127 = vrot.lane.b32.xlu0 %v1121, 127
      %v1128 = vpop.permute.xlu0 %1127
      %1129 = vrot.lane.b32.xlu0 %v1122, 127
      %v1130 = vpop.permute.xlu0 %1129
      %1131 = vrot.lane.b32.xlu0 %v1123, 127
      %v1132 = vpop.permute.xlu0 %1131
      %v1133 = vsel %vm572, %v1128, %v1130
      %v1134 = vsel %vm572, %v1130, %v1132
      %v1137 = vadd.f32 %v1116, %v1133
      %v1138 = vadd.f32 %v1117, %v1134
      %1139 = vst [vmem:[#allocation2 + $0x8] sm:$0xff] %v1137
      %1140 = vst [vmem:[#allocation2 + $0x10] sm:$0xff] %v1138
      %v1141 = vld [vmem:[#allocation2] sm:$0xff]
      %v1142 = vld [vmem:[#allocation2 + $0x8] sm:$0xff]
      %v1143 = vld [vmem:[#allocation2 + $0x10] sm:$0xff]
      %1147 = vrot.lane.b32.xlu0 %v1141, 16
      %v1148 = vpop.permute.xlu0 %1147
      %1149 = vrot.lane.b32.xlu0 %v1142, 16
      %v1150 = vpop.permute.xlu0 %1149
      %1151 = vrot.lane.b32.xlu0 %v1143, 16
      %v1152 = vpop.permute.xlu0 %1151
      %v1153 = vsel %vm518, %v1148, %v1150
      %v1154 = vsel %vm518, %v1150, %v1152
      %v1157 = vadd.f32 %v1137, %v1153
      %v1158 = vadd.f32 %v1138, %v1154
      %v1159 = vld [vmem:[#allocation2 + $0x8] sm:$0xff]
      %v1160 = vld [vmem:[#allocation2 + $0x10] sm:$0xff]
      %v1161 = vld [vmem:[#allocation2 + $0x18] sm:$0xff]
      %1165 = vrot.lane.b32.xlu0 %v1159, 112
      %v1166 = vpop.permute.xlu0 %1165
      %1167 = vrot.lane.b32.xlu0 %v1160, 112
      %v1168 = vpop.permute.xlu0 %1167
      %1169 = vrot.lane.b32.xlu0 %v1161, 112
      %v1170 = vpop.permute.xlu0 %1169
      %v1171 = vsel %vm668, %v1166, %v1168
      %v1172 = vsel %vm668, %v1168, %v1170
      %v1175 = vadd.f32 %v1157, %v1171
      %v1176 = vadd.f32 %v1158, %v1172
      %v1177 = vld [vmem:[%s8] sm:$0xff]
      %1179 = vset.pattern.permute.xlu0 0
      %1180 = vperm.xlu0 %1179, %v1177
      %v1181 = vpop.permute.xlu0 %1180
      %v1183 = vadd.f32 %v1175, %v1181
      %v1184 = vadd.f32 %v1176, %v1181
      %v1185 = vmax.f32 %v1183, 0.0
      %v1186 = vmax.f32 %v1184, 0.0
      %1187 = vst [vmem:[%s332 + $0x30] sm:$0xff] %v1185
      %1188 = vst [vmem:[%s332 + $0x38] sm:$0xff] %v1186
      %p1189 = scmp.lt.s32.totalorder %s20, 1
      %s1190 = scalar_select %p1189, %s20, 1
      %s1191 = smul.addr %s1190, 8
      %s1192 = smul.addr %s1191, 8
      %s1193 = scalar_lea.vmem %s9, %s1192
      // Predicated region
      $region57: #{inception2_forward.1} parent=55 // pred_check
        %p1194 = pneg %p232
      $region58: #{inception2_forward.1} parent=55 // pred_check_branch
        %1196 = sbr.rel (%p1194) target = $region60
      $region59: #{inception2_forward.1} parent=55 // pred_region
        _
      $region60: #{inception2_forward.1} parent=55 // pred_fallthru
        _
    $region56: #{inception2_forward.1} parent=5 // pred_fallthru
      _
    %p1197 = scmp.le.s32.totalorder 2, %s15
    // Predicated region
    $region61: #{inception2_forward.1} parent=5 // pred_check
      %p1198 = pneg %p1197
    $region62: #{inception2_forward.1} parent=5 // pred_check_branch
      %1200 = sbr.rel (%p1198) target = $region64
    $region63: #{inception2_forward.1} parent=5 // pred_region
      %s1201 = ssub.s32 %s15, 2
      // Predicated region
      $region65: #{inception2_forward.1} parent=63 // pred_check
        %p1202 = pneg %p238
      $region66: #{inception2_forward.1} parent=63 // pred_check_branch
        %1204 = sbr.rel (%p1202) target = $region68
      $region67: #{inception2_forward.1} parent=63 // pred_region
        %p1205 = scmp.lt.s32.totalorder %s21, 1
        %s1206 = scalar_select %p1205, %s21, 1
        %s1207 = smul.addr %s1206, 8
        %s1208 = smul.addr %s1207, 8
        %s1209 = scalar_lea.vmem %s9, %s1208
      $region68: #{inception2_forward.1} parent=63 // pred_fallthru
        _
    $region64: #{inception2_forward.1} parent=5 // pred_fallthru
      _
  $region6: #{inception2_forward.1} parent=0 // loop_footer
    %s19 = sadd.s32 1, %s15
  $region7: #{inception2_forward.1} parent=0 // loop_footer_branch
    %14 = sbr.rel target = $region3
  $region8: #{inception2_forward.1} parent=0 // loop_exit
    _

</llo_original>
